<compile_context>
chip_gen: v6e
topology: v6e:2x2x1
jax: 0.10.0
libtpu: 0.0.40
codegen_flags: <defaults>
</compile_context>

<pallas_src>
import jax
import jax.numpy as jnp
from jax.experimental import pallas as pl
from jax.experimental.pallas import tpu as pltpu

EPS = 1e-5

# Rows of the packed scalar slab (each row: values in lanes [0:C], rest zero).
_B1, _G1, _BE1 = 0, 1, 2
_B2, _G2, _BE2 = 3, 4, 5
_B3, _G3, _BE3 = 6, 7, 8
_B4, _G4, _BE4 = 9, 10, 11
_WL, _BL = 12, 13


# ------------------------------ fused kernel ------------------------------

def fused_forward_kernel(slab1_ref, xflat_ref,          # bf16 input slabs
                         w1_ref, w2_ref,                # bf16 big conv weights
                         w3_ref, w4_ref,                # f32 small conv weights
                         sc_ref,                        # (16,128) packed scalars
                         o_ref):                        # (B, 1) output
    B = o_ref.shape[0]
    f32 = jnp.float32
    sc = sc_ref[...]                                    # (16, 128) f32

    def bn_relu(y, g_row, be_row):
        c = y.shape[1]
        mu = jnp.mean(y, axis=0, keepdims=True)
        d = y - mu
        var = jnp.mean(d * d, axis=0, keepdims=True)    # two-pass, biased
        yhat = d * jax.lax.rsqrt(var + EPS)
        return jnp.maximum(yhat * sc[g_row:g_row + 1, :c]
                           + sc[be_row:be_row + 1, :c], 0.0)

    # ---- group1: Conv2d(13,32,k=3) -> MaxPool(2,2) -> BN -> ReLU ----------
    # slab1 rows ordered (corner=(di,dj), pool_h, pool_w, batch); one dot,
    # then the 2x2 stride-2 pool is the max over the four 9B-row blocks.
    y1 = jnp.dot(slab1_ref[...], w1_ref[...], preferred_element_type=f32)   # (36B,32)
    n = 9 * B
    m1 = jnp.maximum(jnp.maximum(y1[0:n], y1[n:2 * n]),
                     jnp.maximum(y1[2 * n:3 * n], y1[3 * n:4 * n]))
    m1 = m1 + sc[_B1:_B1 + 1, :32]                      # bias after the max
    x1 = bn_relu(m1, _G1, _BE1)                         # (9B, 32), rows (h,w,b)

    # ---- group2: Conv2d(13,32,k=8) (full spatial) -> BN -> ReLU -----------
    y2 = (jnp.dot(xflat_ref[...], w2_ref[...], preferred_element_type=f32)
          + sc[_B2:_B2 + 1, :32])
    x2 = bn_relu(y2, _G2, _BE2)                         # (B, 32)

    # ---- group3: Conv2d(32,16,k=2) -> MaxPool(k=2,s=1) -> BN -> ReLU ------
    # One (4B,128)x(128,16) dot: per output position (oh,ow) the 4 taps are
    # lane-concatenated (matching w3's (i,j,c) row order), row-stacked over
    # the 4 output positions; the 2x2 stride-1 pool on the 2x2 map is the max
    # over the four B-row blocks.
    def tap(h, w):
        p = h * 3 + w
        return x1[p * B:(p + 1) * B, :]                 # (B, 32) static slice

    rows3 = []
    for oh in range(2):
        for ow in range(2):
            rows3.append(jnp.concatenate(
                [tap(oh, ow), tap(oh, ow + 1), tap(oh + 1, ow), tap(oh + 1, ow + 1)],
                axis=1))                                # (B, 128)
    lhs3 = jnp.concatenate(rows3, axis=0)               # (4B, 128)
    y3 = jnp.dot(lhs3, w3_ref[...], preferred_element_type=f32)             # (4B, 16)
    m3 = jnp.maximum(jnp.maximum(y3[0:B], y3[B:2 * B]),
                     jnp.maximum(y3[2 * B:3 * B], y3[3 * B:4 * B]))
    m3 = m3 + sc[_B3:_B3 + 1, :16]
    x3 = bn_relu(m3, _G3, _BE3)                         # (B, 16)

    # ---- cat(dim=1) + group4 (1x1 conv) + BN + ReLU -----------------------
    x4 = jnp.concatenate([x2, x3], axis=1)              # (B, 48)
    y4 = (jnp.dot(x4, w4_ref[...], preferred_element_type=f32)
          + sc[_B4:_B4 + 1, :16])
    z = bn_relu(y4, _G4, _BE4)                          # (B, 16)

    # ---- flatten + Linear(16,1) + sigmoid(x/100) --------------------------
    wl = sc[_WL:_WL + 1, :16]
    bl = sc[_BL:_BL + 1, :1]
    logits = jnp.sum(z * wl, axis=1, keepdims=True) + bl
    o_ref[...] = jax.nn.sigmoid(logits / 100.0)


def fused_forward(slab1, xflat, params):
    B = xflat.shape[0]
    args = (slab1, xflat, params["w1"], params["w2"],
            params["w3"], params["w4"], params["sc"])
    vmem = lambda: pl.BlockSpec(memory_space=pltpu.MemorySpace.VMEM)
    return pl.pallas_call(
        fused_forward_kernel,
        out_shape=jax.ShapeDtypeStruct((B, 1), jnp.float32),
        in_specs=[vmem() for _ in args],
        out_specs=vmem(),
    )(*args)


# ------------------------------ glue helpers ------------------------------

def init_params(key):
    """Deterministic synthetic parameters (shapes match CustomNetV2.__init__),
    pre-flattened / pre-padded / pre-packed into kernel layouts."""
    ks = jax.random.split(key, 10)

    def u(k, shape, fan_in):
        lim = 1.0 / (fan_in ** 0.5)
        return jax.random.uniform(k, shape, jnp.float32, -lim, lim)

    p = {}
    # Big conv weights: HWIO flattened to (kh*kw*Cin, Cout), K-padded, bf16.
    w1 = u(ks[0], (3, 3, 13, 32), 117).reshape(117, 32)
    p["w1"] = jnp.pad(w1, ((0, 11), (0, 0))).astype(jnp.bfloat16)    # (128, 32)
    w2 = u(ks[2], (8, 8, 13, 32), 832).reshape(832, 32)
    p["w2"] = jnp.pad(w2, ((0, 64), (0, 0))).astype(jnp.bfloat16)    # (896, 32)
    # Small conv weights stay f32 (their LHS are in-kernel f32 activations).
    p["w3"] = u(ks[4], (2, 2, 32, 16), 128).reshape(128, 16)
    p["w4"] = u(ks[6], (48, 16), 48)                                  # 1x1 conv == dense

    # Packed scalar slab: one (16,128) ref instead of 15 tiny ones.
    def lane_row(v):
        v = jnp.asarray(v, jnp.float32).reshape(-1)
        return jnp.pad(v, (0, 128 - v.shape[0]))

    rows = [
        lane_row(u(ks[1], (32,), 117)),        # b1
        lane_row(jnp.ones(32)),                # g1
        lane_row(jnp.zeros(32)),               # be1
        lane_row(u(ks[3], (32,), 832)),        # b2
        lane_row(jnp.ones(32)),                # g2
        lane_row(jnp.zeros(32)),               # be2
        lane_row(u(ks[5], (16,), 128)),        # b3
        lane_row(jnp.ones(16)),                # g3
        lane_row(jnp.zeros(16)),               # be3
        lane_row(u(ks[7], (16,), 48)),         # b4
        lane_row(jnp.ones(16)),                # g4
        lane_row(jnp.zeros(16)),               # be4
        lane_row(u(ks[8], (16,), 16)),         # wl  (Linear(16,1) as a row)
        lane_row(u(ks[9], (1,), 16)),          # bl
        jnp.zeros(128, jnp.float32),
        jnp.zeros(128, jnp.float32),
    ]
    p["sc"] = jnp.stack(rows, axis=0)          # (16, 128)
    return p


def forward(params, x_nchw):
    """Wrapper: NCHW -> NHWC, one im2col slab + flattened input, then a single
    fused Pallas call.  Only (B, 1) ever comes back from the kernel."""
    x = jnp.transpose(x_nchw, (0, 2, 3, 1)).astype(jnp.float32)       # (B,8,8,13)
    B = x.shape[0]

    # im2col for the 3x3 conv over the full 6x6 output map, row-ordered
    # (corner=(di,dj), pool_h, pool_w, batch) so the in-kernel 2x2/2 pool is
    # three maxes over contiguous row blocks.  K lane-padded 117 -> 128.
    taps = [x[:, i:i + 6, j:j + 6, :] for i in range(3) for j in range(3)]
    patches6 = jnp.stack(taps, axis=3).reshape(B, 6, 6, 117)          # (b,oh,ow,K)
    p6 = patches6.reshape(B, 3, 2, 3, 2, 117)                          # (b,ph,di,pw,dj,K)
    slab1 = jnp.transpose(p6, (2, 4, 1, 3, 0, 5)).reshape(36 * B, 117)
    slab1 = jnp.pad(slab1, ((0, 0), (0, 11))).astype(jnp.bfloat16)     # (36B, 128)

    # Full-spatial flatten for the 8x8 conv, K padded 832 -> 896 (7x128).
    xflat = jnp.pad(x.reshape(B, 832), ((0, 0), (0, 64))).astype(jnp.bfloat16)

    return fused_forward(slab1, xflat, params)


# --------------------------- pure-JAX reference ---------------------------

def reference_forward(params, x_nchw):
    """XLA reference (lax.conv) for a correctness cross-check.  Inputs and the
    two big conv weights are rounded to bf16 (then computed in f32) to match
    the kernel's bf16 MXU operands exactly up to summation order."""
    f32 = jnp.float32
    x = jnp.transpose(x_nchw, (0, 2, 3, 1)).astype(f32)
    B = x.shape[0]
    xq = x.astype(jnp.bfloat16).astype(f32)
    sc = params["sc"]

    def conv(inp, w_hwio, b):
        y = jax.lax.conv_general_dilated(
            inp, w_hwio, window_strides=(1, 1), padding="VALID",
            dimension_numbers=("NHWC", "HWIO", "NHWC"))
        return y + b.reshape(1, 1, 1, -1)

    def bn_relu(y, g, be):
        mu = jnp.mean(y, axis=(0, 1, 2), keepdims=True)
        var = jnp.mean((y - mu) ** 2, axis=(0, 1, 2), keepdims=True)
        yh = (y - mu) * jax.lax.rsqrt(var + EPS)
        return jnp.maximum(yh * g.reshape(1, 1, 1, -1) + be.reshape(1, 1, 1, -1), 0.0)

    w1 = params["w1"].astype(f32)[:117].reshape(3, 3, 13, 32)
    w2 = params["w2"].astype(f32)[:832].reshape(8, 8, 13, 32)
    w3 = params["w3"].reshape(2, 2, 32, 16)
    w4 = params["w4"].reshape(1, 1, 48, 16)

    y1 = conv(xq, w1, sc[_B1, :32])                                    # (B,6,6,32)
    m1 = jnp.maximum(jnp.maximum(y1[:, 0::2, 0::2], y1[:, 0::2, 1::2]),
                     jnp.maximum(y1[:, 1::2, 0::2], y1[:, 1::2, 1::2]))
    x1 = bn_relu(m1, sc[_G1, :32], sc[_BE1, :32])                      # (B,3,3,32)

    x2 = bn_relu(conv(xq, w2, sc[_B2, :32]), sc[_G2, :32], sc[_BE2, :32])  # (B,1,1,32)

    y3 = conv(x1, w3, sc[_B3, :16])                                    # (B,2,2,16)
    m3 = jnp.max(y3, axis=(1, 2), keepdims=True)                       # k=2, s=1 pool
    x3 = bn_relu(m3, sc[_G3, :16], sc[_BE3, :16])                      # (B,1,1,16)

    x4 = jnp.concatenate([x2, x3], axis=-1)                            # (B,1,1,48)
    z = bn_relu(conv(x4, w4, sc[_B4, :16]), sc[_G4, :16], sc[_BE4, :16])
    z = z.reshape(B, 16)
    logits = jnp.dot(z, sc[_WL, :16].reshape(16, 1)) + sc[_BL, :1]
    return jax.nn.sigmoid(logits / 100.0)


if __name__ == "__main__":
    params = init_params(jax.random.PRNGKey(1))
    x = jax.random.normal(jax.random.PRNGKey(0), (2, 13, 8, 8), jnp.float32)

    y = jax.jit(forward)(params, x)
    jax.block_until_ready(y)
    y_ref = jax.jit(reference_forward)(params, x)
    jax.block_until_ready(y_ref)

    assert y.shape == (2, 1)
    assert bool(jnp.all(jnp.isfinite(y))) and bool(jnp.all((y > 0) & (y < 1)))
    assert bool(jnp.allclose(y, y_ref, atol=1e-4, rtol=1e-4))
    print("KERNEL_OK")
</pallas_src>

<mosaic_0001>
module attributes {stable_mosaic.version = 11 : i64} {
  func.func @fused_forward_kernel(%arg0: memref<72x128xbf16, #tpu.memory_space<vmem>>, %arg1: memref<2x896xbf16, #tpu.memory_space<vmem>>, %arg2: memref<128x32xbf16, #tpu.memory_space<vmem>>, %arg3: memref<896x32xbf16, #tpu.memory_space<vmem>>, %arg4: memref<128x16xf32, #tpu.memory_space<vmem>>, %arg5: memref<48x16xf32, #tpu.memory_space<vmem>>, %arg6: memref<16x128xf32, #tpu.memory_space<vmem>>, %arg7: memref<2x1xf32, #tpu.memory_space<vmem>>) attributes {dimension_semantics = [], scalar_prefetch = 0 : i64, scratch_operands = 0 : i64, tpu.core_type = #tpu.core_type<tc>} {
    %c0 = arith.constant 0 : index
    %c0_0 = arith.constant 0 : index
    %0 = vector.load %arg6[%c0, %c0_0] : memref<16x128xf32, #tpu.memory_space<vmem>>, vector<16x128xf32>
    %c0_1 = arith.constant 0 : index
    %c0_2 = arith.constant 0 : index
    %1 = vector.load %arg0[%c0_1, %c0_2] : memref<72x128xbf16, #tpu.memory_space<vmem>>, vector<72x128xbf16>
    %c0_3 = arith.constant 0 : index
    %c0_4 = arith.constant 0 : index
    %2 = vector.load %arg2[%c0_3, %c0_4] : memref<128x32xbf16, #tpu.memory_space<vmem>>, vector<128x32xbf16>
    %cst = arith.constant dense<0.000000e+00> : vector<72x32xf32>
    %3 = tpu.matmul %1, %2, %cst {dimension_numbers = #tpu.dot_dimension_numbers<[1], [0], [0], [1], [0, 0, 1, 1], [], []>} : vector<72x128xbf16>, vector<128x32xbf16>, vector<72x32xf32> -> vector<72x32xf32>
    %4 = vector.extract_strided_slice %3 {offsets = [0, 0], sizes = [18, 32], strides = [1, 1]} : vector<72x32xf32> to vector<18x32xf32>
    %5 = vector.extract_strided_slice %3 {offsets = [18, 0], sizes = [18, 32], strides = [1, 1]} : vector<72x32xf32> to vector<18x32xf32>
    %6 = arith.maximumf %4, %5 : vector<18x32xf32>
    %7 = vector.extract_strided_slice %3 {offsets = [36, 0], sizes = [18, 32], strides = [1, 1]} : vector<72x32xf32> to vector<18x32xf32>
    %8 = vector.extract_strided_slice %3 {offsets = [54, 0], sizes = [18, 32], strides = [1, 1]} : vector<72x32xf32> to vector<18x32xf32>
    %9 = arith.maximumf %7, %8 : vector<18x32xf32>
    %10 = arith.maximumf %6, %9 : vector<18x32xf32>
    %11 = vector.extract_strided_slice %0 {offsets = [0, 0], sizes = [1, 32], strides = [1, 1]} : vector<16x128xf32> to vector<1x32xf32>
    %12 = vector.broadcast %11 : vector<1x32xf32> to vector<18x32xf32>
    %13 = arith.addf %10, %12 : vector<18x32xf32>
    %cst_5 = arith.constant dense<0.000000e+00> : vector<32xf32>
    %14 = vector.multi_reduction <add>, %13, %cst_5 [0] : vector<18x32xf32> to vector<32xf32>
    %15 = vector.shape_cast %14 : vector<32xf32> to vector<1x32xf32>
    %cst_6 = arith.constant 1.800000e+01 : f32
    %16 = vector.broadcast %cst_6 : f32 to vector<1x32xf32>
    %17 = arith.divf %15, %16 : vector<1x32xf32>
    %18 = vector.broadcast %17 : vector<1x32xf32> to vector<18x32xf32>
    %19 = arith.subf %13, %18 : vector<18x32xf32>
    %20 = arith.mulf %19, %19 : vector<18x32xf32>
    %cst_7 = arith.constant dense<0.000000e+00> : vector<32xf32>
    %21 = vector.multi_reduction <add>, %20, %cst_7 [0] : vector<18x32xf32> to vector<32xf32>
    %22 = vector.shape_cast %21 : vector<32xf32> to vector<1x32xf32>
    %cst_8 = arith.constant 1.800000e+01 : f32
    %23 = vector.broadcast %cst_8 : f32 to vector<1x32xf32>
    %24 = arith.divf %22, %23 : vector<1x32xf32>
    %cst_9 = arith.constant 9.99999974E-6 : f32
    %25 = vector.broadcast %cst_9 : f32 to vector<1x32xf32>
    %26 = arith.addf %24, %25 : vector<1x32xf32>
    %27 = math.rsqrt %26 : vector<1x32xf32>
    %28 = vector.broadcast %27 : vector<1x32xf32> to vector<18x32xf32>
    %29 = arith.mulf %19, %28 : vector<18x32xf32>
    %30 = vector.extract_strided_slice %0 {offsets = [1, 0], sizes = [1, 32], strides = [1, 1]} : vector<16x128xf32> to vector<1x32xf32>
    %31 = vector.broadcast %30 : vector<1x32xf32> to vector<18x32xf32>
    %32 = arith.mulf %29, %31 : vector<18x32xf32>
    %33 = vector.extract_strided_slice %0 {offsets = [2, 0], sizes = [1, 32], strides = [1, 1]} : vector<16x128xf32> to vector<1x32xf32>
    %34 = vector.broadcast %33 : vector<1x32xf32> to vector<18x32xf32>
    %35 = arith.addf %32, %34 : vector<18x32xf32>
    %cst_10 = arith.constant 0.000000e+00 : f32
    %36 = vector.broadcast %cst_10 : f32 to vector<18x32xf32>
    %37 = arith.maximumf %35, %36 : vector<18x32xf32>
    %c0_11 = arith.constant 0 : index
    %c0_12 = arith.constant 0 : index
    %38 = vector.load %arg1[%c0_11, %c0_12] : memref<2x896xbf16, #tpu.memory_space<vmem>>, vector<2x896xbf16>
    %c0_13 = arith.constant 0 : index
    %c0_14 = arith.constant 0 : index
    %39 = vector.load %arg3[%c0_13, %c0_14] : memref<896x32xbf16, #tpu.memory_space<vmem>>, vector<896x32xbf16>
    %cst_15 = arith.constant dense<0.000000e+00> : vector<2x32xf32>
    %40 = tpu.matmul %38, %39, %cst_15 {dimension_numbers = #tpu.dot_dimension_numbers<[1], [0], [0], [1], [0, 0, 1, 1], [], []>} : vector<2x896xbf16>, vector<896x32xbf16>, vector<2x32xf32> -> vector<2x32xf32>
    %41 = vector.extract_strided_slice %0 {offsets = [3, 0], sizes = [1, 32], strides = [1, 1]} : vector<16x128xf32> to vector<1x32xf32>
    %42 = vector.broadcast %41 : vector<1x32xf32> to vector<2x32xf32>
    %43 = arith.addf %40, %42 : vector<2x32xf32>
    %cst_16 = arith.constant dense<0.000000e+00> : vector<32xf32>
    %44 = vector.multi_reduction <add>, %43, %cst_16 [0] : vector<2x32xf32> to vector<32xf32>
    %45 = vector.shape_cast %44 : vector<32xf32> to vector<1x32xf32>
    %cst_17 = arith.constant 2.000000e+00 : f32
    %46 = vector.broadcast %cst_17 : f32 to vector<1x32xf32>
    %47 = arith.divf %45, %46 : vector<1x32xf32>
    %48 = vector.broadcast %47 : vector<1x32xf32> to vector<2x32xf32>
    %49 = arith.subf %43, %48 : vector<2x32xf32>
    %50 = arith.mulf %49, %49 : vector<2x32xf32>
    %cst_18 = arith.constant dense<0.000000e+00> : vector<32xf32>
    %51 = vector.multi_reduction <add>, %50, %cst_18 [0] : vector<2x32xf32> to vector<32xf32>
    %52 = vector.shape_cast %51 : vector<32xf32> to vector<1x32xf32>
    %cst_19 = arith.constant 2.000000e+00 : f32
    %53 = vector.broadcast %cst_19 : f32 to vector<1x32xf32>
    %54 = arith.divf %52, %53 : vector<1x32xf32>
    %cst_20 = arith.constant 9.99999974E-6 : f32
    %55 = vector.broadcast %cst_20 : f32 to vector<1x32xf32>
    %56 = arith.addf %54, %55 : vector<1x32xf32>
    %57 = math.rsqrt %56 : vector<1x32xf32>
    %58 = vector.broadcast %57 : vector<1x32xf32> to vector<2x32xf32>
    %59 = arith.mulf %49, %58 : vector<2x32xf32>
    %60 = vector.extract_strided_slice %0 {offsets = [4, 0], sizes = [1, 32], strides = [1, 1]} : vector<16x128xf32> to vector<1x32xf32>
    %61 = vector.broadcast %60 : vector<1x32xf32> to vector<2x32xf32>
    %62 = arith.mulf %59, %61 : vector<2x32xf32>
    %63 = vector.extract_strided_slice %0 {offsets = [5, 0], sizes = [1, 32], strides = [1, 1]} : vector<16x128xf32> to vector<1x32xf32>
    %64 = vector.broadcast %63 : vector<1x32xf32> to vector<2x32xf32>
    %65 = arith.addf %62, %64 : vector<2x32xf32>
    %cst_21 = arith.constant 0.000000e+00 : f32
    %66 = vector.broadcast %cst_21 : f32 to vector<2x32xf32>
    %67 = arith.maximumf %65, %66 : vector<2x32xf32>
    %68 = vector.extract_strided_slice %37 {offsets = [0, 0], sizes = [2, 32], strides = [1, 1]} : vector<18x32xf32> to vector<2x32xf32>
    %69 = vector.extract_strided_slice %37 {offsets = [2, 0], sizes = [2, 32], strides = [1, 1]} : vector<18x32xf32> to vector<2x32xf32>
    %70 = vector.extract_strided_slice %37 {offsets = [6, 0], sizes = [2, 32], strides = [1, 1]} : vector<18x32xf32> to vector<2x32xf32>
    %71 = vector.extract_strided_slice %37 {offsets = [8, 0], sizes = [2, 32], strides = [1, 1]} : vector<18x32xf32> to vector<2x32xf32>
    %72 = tpu.concatenate %68, %69, %70, %71 in 1 : vector<2x32xf32>, vector<2x32xf32>, vector<2x32xf32>, vector<2x32xf32> -> vector<2x128xf32>
    %73 = vector.extract_strided_slice %37 {offsets = [2, 0], sizes = [2, 32], strides = [1, 1]} : vector<18x32xf32> to vector<2x32xf32>
    %74 = vector.extract_strided_slice %37 {offsets = [4, 0], sizes = [2, 32], strides = [1, 1]} : vector<18x32xf32> to vector<2x32xf32>
    %75 = vector.extract_strided_slice %37 {offsets = [8, 0], sizes = [2, 32], strides = [1, 1]} : vector<18x32xf32> to vector<2x32xf32>
    %76 = vector.extract_strided_slice %37 {offsets = [10, 0], sizes = [2, 32], strides = [1, 1]} : vector<18x32xf32> to vector<2x32xf32>
    %77 = tpu.concatenate %73, %74, %75, %76 in 1 : vector<2x32xf32>, vector<2x32xf32>, vector<2x32xf32>, vector<2x32xf32> -> vector<2x128xf32>
    %78 = vector.extract_strided_slice %37 {offsets = [6, 0], sizes = [2, 32], strides = [1, 1]} : vector<18x32xf32> to vector<2x32xf32>
    %79 = vector.extract_strided_slice %37 {offsets = [8, 0], sizes = [2, 32], strides = [1, 1]} : vector<18x32xf32> to vector<2x32xf32>
    %80 = vector.extract_strided_slice %37 {offsets = [12, 0], sizes = [2, 32], strides = [1, 1]} : vector<18x32xf32> to vector<2x32xf32>
    %81 = vector.extract_strided_slice %37 {offsets = [14, 0], sizes = [2, 32], strides = [1, 1]} : vector<18x32xf32> to vector<2x32xf32>
    %82 = tpu.concatenate %78, %79, %80, %81 in 1 : vector<2x32xf32>, vector<2x32xf32>, vector<2x32xf32>, vector<2x32xf32> -> vector<2x128xf32>
    %83 = vector.extract_strided_slice %37 {offsets = [8, 0], sizes = [2, 32], strides = [1, 1]} : vector<18x32xf32> to vector<2x32xf32>
    %84 = vector.extract_strided_slice %37 {offsets = [10, 0], sizes = [2, 32], strides = [1, 1]} : vector<18x32xf32> to vector<2x32xf32>
    %85 = vector.extract_strided_slice %37 {offsets = [14, 0], sizes = [2, 32], strides = [1, 1]} : vector<18x32xf32> to vector<2x32xf32>
    %86 = vector.extract_strided_slice %37 {offsets = [16, 0], sizes = [2, 32], strides = [1, 1]} : vector<18x32xf32> to vector<2x32xf32>
    %87 = tpu.concatenate %83, %84, %85, %86 in 1 : vector<2x32xf32>, vector<2x32xf32>, vector<2x32xf32>, vector<2x32xf32> -> vector<2x128xf32>
    %88 = tpu.concatenate %72, %77, %82, %87 in 0 : vector<2x128xf32>, vector<2x128xf32>, vector<2x128xf32>, vector<2x128xf32> -> vector<8x128xf32>
    %c0_22 = arith.constant 0 : index
    %c0_23 = arith.constant 0 : index
    %89 = vector.load %arg4[%c0_22, %c0_23] : memref<128x16xf32, #tpu.memory_space<vmem>>, vector<128x16xf32>
    %cst_24 = arith.constant dense<0.000000e+00> : vector<8x16xf32>
    %90 = tpu.matmul %88, %89, %cst_24 {dimension_numbers = #tpu.dot_dimension_numbers<[1], [0], [0], [1], [0, 0, 1, 1], [], []>} : vector<8x128xf32>, vector<128x16xf32>, vector<8x16xf32> -> vector<8x16xf32>
    %91 = vector.extract_strided_slice %90 {offsets = [0, 0], sizes = [2, 16], strides = [1, 1]} : vector<8x16xf32> to vector<2x16xf32>
    %92 = vector.extract_strided_slice %90 {offsets = [2, 0], sizes = [2, 16], strides = [1, 1]} : vector<8x16xf32> to vector<2x16xf32>
    %93 = arith.maximumf %91, %92 : vector<2x16xf32>
    %94 = vector.extract_strided_slice %90 {offsets = [4, 0], sizes = [2, 16], strides = [1, 1]} : vector<8x16xf32> to vector<2x16xf32>
    %95 = vector.extract_strided_slice %90 {offsets = [6, 0], sizes = [2, 16], strides = [1, 1]} : vector<8x16xf32> to vector<2x16xf32>
    %96 = arith.maximumf %94, %95 : vector<2x16xf32>
    %97 = arith.maximumf %93, %96 : vector<2x16xf32>
    %98 = vector.extract_strided_slice %0 {offsets = [6, 0], sizes = [1, 16], strides = [1, 1]} : vector<16x128xf32> to vector<1x16xf32>
    %99 = vector.broadcast %98 : vector<1x16xf32> to vector<2x16xf32>
    %100 = arith.addf %97, %99 : vector<2x16xf32>
    %cst_25 = arith.constant dense<0.000000e+00> : vector<16xf32>
    %101 = vector.multi_reduction <add>, %100, %cst_25 [0] : vector<2x16xf32> to vector<16xf32>
    %102 = vector.shape_cast %101 : vector<16xf32> to vector<1x16xf32>
    %cst_26 = arith.constant 2.000000e+00 : f32
    %103 = vector.broadcast %cst_26 : f32 to vector<1x16xf32>
    %104 = arith.divf %102, %103 : vector<1x16xf32>
    %105 = vector.broadcast %104 : vector<1x16xf32> to vector<2x16xf32>
    %106 = arith.subf %100, %105 : vector<2x16xf32>
    %107 = arith.mulf %106, %106 : vector<2x16xf32>
    %cst_27 = arith.constant dense<0.000000e+00> : vector<16xf32>
    %108 = vector.multi_reduction <add>, %107, %cst_27 [0] : vector<2x16xf32> to vector<16xf32>
    %109 = vector.shape_cast %108 : vector<16xf32> to vector<1x16xf32>
    %cst_28 = arith.constant 2.000000e+00 : f32
    %110 = vector.broadcast %cst_28 : f32 to vector<1x16xf32>
    %111 = arith.divf %109, %110 : vector<1x16xf32>
    %cst_29 = arith.constant 9.99999974E-6 : f32
    %112 = vector.broadcast %cst_29 : f32 to vector<1x16xf32>
    %113 = arith.addf %111, %112 : vector<1x16xf32>
    %114 = math.rsqrt %113 : vector<1x16xf32>
    %115 = vector.broadcast %114 : vector<1x16xf32> to vector<2x16xf32>
    %116 = arith.mulf %106, %115 : vector<2x16xf32>
    %117 = vector.extract_strided_slice %0 {offsets = [7, 0], sizes = [1, 16], strides = [1, 1]} : vector<16x128xf32> to vector<1x16xf32>
    %118 = vector.broadcast %117 : vector<1x16xf32> to vector<2x16xf32>
    %119 = arith.mulf %116, %118 : vector<2x16xf32>
    %120 = vector.extract_strided_slice %0 {offsets = [8, 0], sizes = [1, 16], strides = [1, 1]} : vector<16x128xf32> to vector<1x16xf32>
    %121 = vector.broadcast %120 : vector<1x16xf32> to vector<2x16xf32>
    %122 = arith.addf %119, %121 : vector<2x16xf32>
    %cst_30 = arith.constant 0.000000e+00 : f32
    %123 = vector.broadcast %cst_30 : f32 to vector<2x16xf32>
    %124 = arith.maximumf %122, %123 : vector<2x16xf32>
    %125 = tpu.concatenate %67, %124 in 1 : vector<2x32xf32>, vector<2x16xf32> -> vector<2x48xf32>
    %c0_31 = arith.constant 0 : index
    %c0_32 = arith.constant 0 : index
    %126 = vector.load %arg5[%c0_31, %c0_32] : memref<48x16xf32, #tpu.memory_space<vmem>>, vector<48x16xf32>
    %cst_33 = arith.constant dense<0.000000e+00> : vector<2x16xf32>
    %127 = tpu.matmul %125, %126, %cst_33 {dimension_numbers = #tpu.dot_dimension_numbers<[1], [0], [0], [1], [0, 0, 1, 1], [], []>} : vector<2x48xf32>, vector<48x16xf32>, vector<2x16xf32> -> vector<2x16xf32>
    %128 = vector.extract_strided_slice %0 {offsets = [9, 0], sizes = [1, 16], strides = [1, 1]} : vector<16x128xf32> to vector<1x16xf32>
    %129 = vector.broadcast %128 : vector<1x16xf32> to vector<2x16xf32>
    %130 = arith.addf %127, %129 : vector<2x16xf32>
    %cst_34 = arith.constant dense<0.000000e+00> : vector<16xf32>
    %131 = vector.multi_reduction <add>, %130, %cst_34 [0] : vector<2x16xf32> to vector<16xf32>
    %132 = vector.shape_cast %131 : vector<16xf32> to vector<1x16xf32>
    %cst_35 = arith.constant 2.000000e+00 : f32
    %133 = vector.broadcast %cst_35 : f32 to vector<1x16xf32>
    %134 = arith.divf %132, %133 : vector<1x16xf32>
    %135 = vector.broadcast %134 : vector<1x16xf32> to vector<2x16xf32>
    %136 = arith.subf %130, %135 : vector<2x16xf32>
    %137 = arith.mulf %136, %136 : vector<2x16xf32>
    %cst_36 = arith.constant dense<0.000000e+00> : vector<16xf32>
    %138 = vector.multi_reduction <add>, %137, %cst_36 [0] : vector<2x16xf32> to vector<16xf32>
    %139 = vector.shape_cast %138 : vector<16xf32> to vector<1x16xf32>
    %cst_37 = arith.constant 2.000000e+00 : f32
    %140 = vector.broadcast %cst_37 : f32 to vector<1x16xf32>
    %141 = arith.divf %139, %140 : vector<1x16xf32>
    %cst_38 = arith.constant 9.99999974E-6 : f32
    %142 = vector.broadcast %cst_38 : f32 to vector<1x16xf32>
    %143 = arith.addf %141, %142 : vector<1x16xf32>
    %144 = math.rsqrt %143 : vector<1x16xf32>
    %145 = vector.broadcast %144 : vector<1x16xf32> to vector<2x16xf32>
    %146 = arith.mulf %136, %145 : vector<2x16xf32>
    %147 = vector.extract_strided_slice %0 {offsets = [10, 0], sizes = [1, 16], strides = [1, 1]} : vector<16x128xf32> to vector<1x16xf32>
    %148 = vector.broadcast %147 : vector<1x16xf32> to vector<2x16xf32>
    %149 = arith.mulf %146, %148 : vector<2x16xf32>
    %150 = vector.extract_strided_slice %0 {offsets = [11, 0], sizes = [1, 16], strides = [1, 1]} : vector<16x128xf32> to vector<1x16xf32>
    %151 = vector.broadcast %150 : vector<1x16xf32> to vector<2x16xf32>
    %152 = arith.addf %149, %151 : vector<2x16xf32>
    %cst_39 = arith.constant 0.000000e+00 : f32
    %153 = vector.broadcast %cst_39 : f32 to vector<2x16xf32>
    %154 = arith.maximumf %152, %153 : vector<2x16xf32>
    %155 = vector.extract_strided_slice %0 {offsets = [12, 0], sizes = [1, 16], strides = [1, 1]} : vector<16x128xf32> to vector<1x16xf32>
    %156 = vector.extract_strided_slice %0 {offsets = [13, 0], sizes = [1, 1], strides = [1, 1]} : vector<16x128xf32> to vector<1x1xf32>
    %157 = vector.broadcast %155 : vector<1x16xf32> to vector<2x16xf32>
    %158 = arith.mulf %154, %157 : vector<2x16xf32>
    %cst_40 = arith.constant dense<0.000000e+00> : vector<2xf32>
    %159 = vector.multi_reduction <add>, %158, %cst_40 [1] : vector<2x16xf32> to vector<2xf32>
    %160 = vector.shape_cast %159 : vector<2xf32> to vector<2x1xf32>
    %161 = vector.broadcast %156 : vector<1x1xf32> to vector<2x1xf32>
    %162 = arith.addf %160, %161 : vector<2x1xf32>
    %cst_41 = arith.constant 1.000000e+02 : f32
    %163 = vector.broadcast %cst_41 : f32 to vector<2x1xf32>
    %164 = arith.divf %162, %163 : vector<2x1xf32>
    %165 = arith.negf %164 : vector<2x1xf32>
    %166 = math.exp %165 : vector<2x1xf32>
    %cst_42 = arith.constant 1.000000e+00 : f32
    %167 = vector.broadcast %cst_42 : f32 to vector<2x1xf32>
    %168 = arith.addf %167, %166 : vector<2x1xf32>
    %169 = arith.divf %167, %168 : vector<2x1xf32>
    %c0_43 = arith.constant 0 : index
    %c0_44 = arith.constant 0 : index
    %170 = vector.load %arg7[%c0_43, %c0_44] : memref<2x1xf32, #tpu.memory_space<vmem>>, vector<2x1xf32>
    tpu.vector_store %arg7[%c0_43, %c0_44], %169 {strides = array<i32>} : memref<2x1xf32, #tpu.memory_space<vmem>>, vector<2x1xf32>,
    return
  }
}

</mosaic_0001>

<llo_original>
// kernel: forward.1
$region0: #{forward.1}
  #allocation0 [shape = 'u32[]', space=smem, size = 0x4, offset = 0x4, fixed_abs, tag = 'smem constant byte address 0x4 - core index']
  #allocation1 [shape = 'u32[144,128]{1,0:T(1,128)}', space=vmem, size = 0x12000, scoped, tag = 'internal scratch']
  %s0 = inlined_call_operand.vmem [shape: bf16[72,128], index: 0, kind: input, shape index: {}]
  %s1 = inlined_call_operand.vmem [shape: bf16[2,896], index: 1, kind: input, shape index: {}]
  %s2 = inlined_call_operand.vmem [shape: bf16[128,32], index: 2, kind: input, shape index: {}]
  %s3 = inlined_call_operand.vmem [shape: bf16[896,32], index: 3, kind: input, shape index: {}]
  %s4 = inlined_call_operand.vmem [shape: f32[128,16], index: 4, kind: input, shape index: {}]
  %s5 = inlined_call_operand.vmem [shape: f32[48,16], index: 5, kind: input, shape index: {}]
  %s6 = inlined_call_operand.vmem [shape: f32[16,128], index: 6, kind: input, shape index: {}]
  %s7 = inlined_call_operand.vmem [shape: f32[2,1], index: 7, kind: output, shape index: {}]
  %s8 = sld [smem:[#allocation0]]
  $region38: #{forward.1} parent=0
    _
  %s10 = ssub.s32 1, %s8
  %s11 = scalar_select 0, %s10, %s8
  // Predicated region
  $region2: #{forward.1} parent=0 // pred_check
    _
  $region3: #{forward.1} parent=0 // pred_check_branch
    %13 = sbr.rel (0) target = $region5
  $region4: #{forward.1} parent=0 // pred_region
    _
  $region5: #{forward.1} parent=0 // pred_fallthru
    _
  // Predicated region
  $region6: #{forward.1} parent=0 // pred_check
    _
  $region7: #{forward.1} parent=0 // pred_check_branch
    %15 = sbr.rel (0) target = $region9
  $region8: #{forward.1} parent=0 // pred_region
    _
  $region9: #{forward.1} parent=0 // pred_fallthru
    _
  // Predicated region
  $region10: #{forward.1} parent=0 // pred_check
    _
  $region11: #{forward.1} parent=0 // pred_check_branch
    %17 = sbr.rel (0) target = $region13
  $region12: #{forward.1} parent=0 // pred_region
    _
  $region13: #{forward.1} parent=0 // pred_fallthru
    _
  // Predicated region
  $region14: #{forward.1} parent=0 // pred_check
    _
  $region15: #{forward.1} parent=0 // pred_check_branch
    %19 = sbr.rel (0) target = $region17
  $region16: #{forward.1} parent=0 // pred_region
    _
  $region17: #{forward.1} parent=0 // pred_fallthru
    _
  // Predicated region
  $region18: #{forward.1} parent=0 // pred_check
    _
  $region19: #{forward.1} parent=0 // pred_check_branch
    %21 = sbr.rel (0) target = $region21
  $region20: #{forward.1} parent=0 // pred_region
    _
  $region21: #{forward.1} parent=0 // pred_fallthru
    _
  // Predicated region
  $region22: #{forward.1} parent=0 // pred_check
    _
  $region23: #{forward.1} parent=0 // pred_check_branch
    %23 = sbr.rel (0) target = $region25
  $region24: #{forward.1} parent=0 // pred_region
    _
  $region25: #{forward.1} parent=0 // pred_fallthru
    _
  // Predicated region
  $region26: #{forward.1} parent=0 // pred_check
    _
  $region27: #{forward.1} parent=0 // pred_check_branch
    %25 = sbr.rel (0) target = $region29
  $region28: #{forward.1} parent=0 // pred_region
    _
  $region29: #{forward.1} parent=0 // pred_fallthru
    _
  %v27 = vld [vmem:[%s6] sm:$0xff]
  %v28 = vld [vmem:[%s6 + $0x8] sm:$0xff]
  %v29 = vld [vmem:[%s0] sm:$0xf]
  %v30 = vld [vmem:[%s0 + $0x4] sm:$0xf]
  %v31 = vld [vmem:[%s0 + $0x8] sm:$0xf]
  %v32 = vld [vmem:[%s0 + $0xc] sm:$0xf]
  %v33 = vld [vmem:[%s0 + $0x10] sm:$0xf]
  %v34 = vld [vmem:[%s0 + $0x14] sm:$0xf]
  %v35 = vld [vmem:[%s0 + $0x18] sm:$0xf]
  %v36 = vld [vmem:[%s0 + $0x1c] sm:$0xf]
  %v37 = vld [vmem:[%s0 + $0x20] sm:$0xf]
  %v38 = vld [vmem:[%s2] sm:$0xf]
  %v39 = vld [vmem:[%s2 + $0x4] sm:$0xf]
  %v40 = vld [vmem:[%s2 + $0x8] sm:$0xf]
  %v41 = vld [vmem:[%s2 + $0xc] sm:$0xf]
  %v42 = vld [vmem:[%s2 + $0x10] sm:$0xf]
  %v43 = vld [vmem:[%s2 + $0x14] sm:$0xf]
  %v44 = vld [vmem:[%s2 + $0x18] sm:$0xf]
  %v45 = vld [vmem:[%s2 + $0x1c] sm:$0xf]
  %v46 = vld [vmem:[%s2 + $0x20] sm:$0xf]
  %v47 = vld [vmem:[%s2 + $0x24] sm:$0xf]
  %v48 = vld [vmem:[%s2 + $0x28] sm:$0xf]
  %v49 = vld [vmem:[%s2 + $0x2c] sm:$0xf]
  %v50 = vld [vmem:[%s2 + $0x30] sm:$0xf]
  %v51 = vld [vmem:[%s2 + $0x34] sm:$0xf]
  %v52 = vld [vmem:[%s2 + $0x38] sm:$0xf]
  %v53 = vld [vmem:[%s2 + $0x3c] sm:$0xf]
  %v63 = vunpack.c.l.b16 %v29
  %v64 = vunpack.c.l.b16 %v30
  %v65 = vunpack.c.l.b16 %v31
  %v66 = vunpack.c.l.b16 %v32
  %v67 = vunpack.c.l.b16 %v33
  %v68 = vunpack.c.l.b16 %v34
  %v69 = vunpack.c.l.b16 %v35
  %v70 = vunpack.c.l.b16 %v36
  %v71 = vunpack.c.l.b16 %v37
  %v72 = vpack.c.b16 %v64, %v63
  %v73 = vpack.c.b16 %v66, %v65
  %v74 = vpack.c.b16 %v68, %v67
  %v75 = vpack.c.b16 %v70, %v69
  %v76 = vpack.c.b16 %v71, %v71
  %v98 = vunpack.c.l.b16 %v38
  %v99 = vunpack.c.l.b16 %v39
  %v100 = vunpack.c.l.b16 %v40
  %v101 = vunpack.c.l.b16 %v41
  %v102 = vunpack.c.l.b16 %v42
  %v103 = vunpack.c.l.b16 %v43
  %v104 = vunpack.c.l.b16 %v44
  %v105 = vunpack.c.l.b16 %v45
  %v106 = vunpack.c.l.b16 %v46
  %v107 = vunpack.c.l.b16 %v47
  %v108 = vunpack.c.l.b16 %v48
  %v109 = vunpack.c.l.b16 %v49
  %v110 = vunpack.c.l.b16 %v50
  %v111 = vunpack.c.l.b16 %v51
  %v112 = vunpack.c.l.b16 %v52
  %v113 = vunpack.c.l.b16 %v53
  %v114 = vpack.c.b16 %v99, %v98
  %v115 = vpack.c.b16 %v101, %v100
  %v116 = vpack.c.b16 %v103, %v102
  %v117 = vpack.c.b16 %v105, %v104
  %v118 = vpack.c.b16 %v107, %v106
  %v119 = vpack.c.b16 %v109, %v108
  %v120 = vpack.c.b16 %v111, %v110
  %v121 = vpack.c.b16 %v113, %v112
  %130 = vmatprep.subr.bf16.mxu0 0
  %131 = vmatpush1.bf16.msra.mxu0 %v121
  %132 = vmatprep.subr.bf16.mxu0 0
  %133 = vmatpush1.bf16.msra.mxu0 %v120
  %134 = vmatprep.subr.bf16.mxu0 0
  %135 = vmatpush1.bf16.msra.mxu0 %v119
  %136 = vmatprep.subr.bf16.mxu0 0
  %137 = vmatpush1.bf16.msra.mxu0 %v118
  %138 = vmatprep.subr.bf16.mxu0 0
  %139 = vmatpush1.bf16.msra.mxu0 %v117
  %140 = vmatprep.subr.bf16.mxu0 0
  %141 = vmatpush1.bf16.msra.mxu0 %v116
  %142 = vmatprep.subr.bf16.mxu0 0
  %143 = vmatpush1.bf16.msra.mxu0 %v115
  %144 = vmatprep.subr.bf16.mxu0 0
  %145 = vmatpush1.bf16.msra.mxu0 %v114
  %146 = vmatprep.subr.bf16.mxu0 0
  %147 = vmatpush2.bf16.msra.mxu0 0
  %148 = vmatprep.subr.bf16.mxu0 0
  %149 = vmatpush2.bf16.msra.mxu0 0
  %150 = vmatprep.subr.bf16.mxu0 0
  %151 = vmatpush2.bf16.msra.mxu0 0
  %152 = vmatprep.subr.bf16.mxu0 0
  %153 = vmatpush2.bf16.msra.mxu0 0
  %154 = vmatprep.subr.bf16.mxu0 0
  %155 = vmatpush2.bf16.msra.mxu0 0
  %156 = vmatprep.subr.bf16.mxu0 0
  %157 = vmatpush2.bf16.msra.mxu0 0
  %158 = vmatprep.subr.bf16.mxu0 0
  %159 = vmatpush2.bf16.msra.mxu0 0
  %160 = vmatprep.subr.bf16.mxu0 0
  %161 = vmatpush2.bf16.msra.mxu0 0
  %162 = vmatprep.mubr.bf16.mxu0 0
  %163 = vmatmul.mubr.bf16.gmra.mxu0 %v72
  %v164 = vpop.f32.mrf.mxu0
  %v165 = vadd.f32 0.0, %v164
  %v166 = vpop.f32.mrf.mxu0
  %v167 = vpop.f32.mrf.mxu0
  %v168 = vadd.f32 0.0, %v167
  %v169 = vpop.f32.mrf.mxu0
  %170 = vmatprep.mubr.bf16.mxu0 0
  %171 = vmatmul.mubr.bf16.gmra.mxu0 %v73
  %v172 = vpop.f32.mrf.mxu0
  %v173 = vadd.f32 0.0, %v172
  %v174 = vpop.f32.mrf.mxu0
  %v175 = vpop.f32.mrf.mxu0
  %v176 = vadd.f32 0.0, %v175
  %v177 = vpop.f32.mrf.mxu0
  %178 = vmatprep.mubr.bf16.mxu0 0
  %179 = vmatmul.mubr.bf16.gmra.mxu0 %v74
  %v180 = vpop.f32.mrf.mxu0
  %v181 = vadd.f32 0.0, %v180
  %v182 = vpop.f32.mrf.mxu0
  %v183 = vpop.f32.mrf.mxu0
  %v184 = vadd.f32 0.0, %v183
  %v185 = vpop.f32.mrf.mxu0
  %186 = vmatprep.mubr.bf16.mxu0 0
  %187 = vmatmul.mubr.bf16.gmra.mxu0 %v75
  %v188 = vpop.f32.mrf.mxu0
  %v189 = vadd.f32 0.0, %v188
  %v190 = vpop.f32.mrf.mxu0
  %v191 = vpop.f32.mrf.mxu0
  %v192 = vadd.f32 0.0, %v191
  %v193 = vpop.f32.mrf.mxu0
  %194 = vmatprep.mubr.bf16.mxu0 0
  %195 = vmatmul.mubr.bf16.gmra.mxu0 %v76
  %v196 = vpop.f32.mrf.mxu0
  %v197 = vadd.f32 0.0, %v196
  %v198 = vpop.f32.mrf.mxu0
  %v199 = vpop.f32.mrf.mxu0
  %v200 = vpop.f32.mrf.mxu0
  %201 = vdwg.mxu0
  %vm205 = vcmask 1045504
  %v206 = vrot.slane %v173, 2
  %v207 = vrot.slane %v176, 2
  %v208 = vsel %vm205, %v206, %v207
  %v209 = vrot.slane %v181, 2
  %v210 = vsel %vm205, %v207, %v209
  %v214 = vmax.f32 %v165, %v208
  %v215 = vmax.f32 %v168, %v210
  %v216 = vmax.f32 %v173, %v209
  %v220 = vrot.slane %v189, 2
  %v221 = vrot.slane %v192, 2
  %v222 = vsel %vm205, %v220, %v221
  %v223 = vrot.slane %v197, 2
  %v224 = vsel %vm205, %v221, %v223
  %v228 = vmax.f32 %v181, %v222
  %v229 = vmax.f32 %v184, %v224
  %v230 = vmax.f32 %v189, %v223
  %vm234 = vcmask 1043456
  %v235 = vrot.slane %v228, 4
  %v236 = vrot.slane %v229, 4
  %v237 = vsel %vm234, %v235, %v236
  %v238 = vrot.slane %v230, 4
  %v239 = vsel %vm234, %v236, %v238
  %v243 = vmax.f32 %v214, %v237
  %v244 = vmax.f32 %v215, %v239
  %v245 = vmax.f32 %v216, %v238
  %v246 = vlaneseq
  %v247 = vshrl.u32 %v246, 7
  %v248 = vsub.s32 0, %v247
  %v249 = vrot.slane %v27, %v248
  %v250 = vadd.f32 %v243, %v249
  %v251 = vadd.f32 %v244, %v249
  %v252 = vadd.f32 %v245, %v249
  %vm253 = vcmask 261120
  %v254 = vsel %vm253, %v250, 0.0
  %v255 = vsel %vm253, %v251, 0.0
  %v256 = vadd.f32 %v254, %v255
  %vm257 = vcmask 254976
  %v258 = vsel %vm257, %v252, 0.0
  %v259 = vadd.f32 %v256, %v258
  %v260 = vrot.slane %v259, 4
  %v261 = vadd.f32 %v259, %v260
  %v262 = vrot.slane %v261, 2
  %v263 = vadd.f32 %v261, %v262
  %v264 = vrot.slane %v263, 1
  %v265 = vadd.f32 %v263, %v264
  %v266 = vrcp.pop 18.0
  %v267 = vmul.f32 %v265, %v266
  %v268 = vsub.f32 %v250, %v267
  %v269 = vsub.f32 %v251, %v267
  %v270 = vsub.f32 %v252, %v267
  %v271 = vmul.f32 %v268, %v268
  %v272 = vmul.f32 %v269, %v269
  %v273 = vmul.f32 %v270, %v270
  %v274 = vsel %vm253, %v271, 0.0
  %v275 = vsel %vm253, %v272, 0.0
  %v276 = vadd.f32 %v274, %v275
  %v277 = vsel %vm257, %v273, 0.0
  %v278 = vadd.f32 %v276, %v277
  %v279 = vrot.slane %v278, 4
  %v280 = vadd.f32 %v278, %v279
  %v281 = vrot.slane %v280, 2
  %v282 = vadd.f32 %v280, %v281
  %v283 = vrot.slane %v282, 1
  %v284 = vadd.f32 %v282, %v283
  %v285 = vmul.f32 %v284, %v266
  %v286 = vadd.f32 %v285, 1e-05
  %v287 = vrsqrt.pop %v286
  %v288 = vmul.f32 %v268, %v287
  %v289 = vmul.f32 %v269, %v287
  %v290 = vmul.f32 %v270, %v287
  %v291 = vlaneseq
  %v292 = vshrl.u32 %v291, 7
  %v293 = vsub.s32 1, %v292
  %v294 = vrot.slane %v27, %v293
  %v295 = vmul.f32 %v288, %v294
  %v296 = vmul.f32 %v289, %v294
  %v297 = vmul.f32 %v290, %v294
  %v298 = vlaneseq
  %v299 = vshrl.u32 %v298, 7
  %v300 = vsub.s32 2, %v299
  %v301 = vrot.slane %v27, %v300
  %v302 = vadd.f32 %v295, %v301
  %v303 = vadd.f32 %v296, %v301
  %v304 = vadd.f32 %v297, %v301
  %v305 = vmax.f32 %v302, 0.0
  %v306 = vmax.f32 %v303, 0.0
  %v307 = vmax.f32 %v304, 0.0
  %v308 = vld [vmem:[%s1] sm:$0x7f]
  %v309 = vld [vmem:[%s3] sm:$0xf]
  %v310 = vld [vmem:[%s3 + $0x4] sm:$0xf]
  %v311 = vld [vmem:[%s3 + $0x8] sm:$0xf]
  %v312 = vld [vmem:[%s3 + $0xc] sm:$0xf]
  %v313 = vld [vmem:[%s3 + $0x10] sm:$0xf]
  %v314 = vld [vmem:[%s3 + $0x14] sm:$0xf]
  %v315 = vld [vmem:[%s3 + $0x18] sm:$0xf]
  %v316 = vld [vmem:[%s3 + $0x1c] sm:$0xf]
  %v317 = vld [vmem:[%s3 + $0x20] sm:$0xf]
  %v318 = vld [vmem:[%s3 + $0x24] sm:$0xf]
  %v319 = vld [vmem:[%s3 + $0x28] sm:$0xf]
  %v320 = vld [vmem:[%s3 + $0x2c] sm:$0xf]
  %v321 = vld [vmem:[%s3 + $0x30] sm:$0xf]
  %v322 = vld [vmem:[%s3 + $0x34] sm:$0xf]
  %v323 = vld [vmem:[%s3 + $0x38] sm:$0xf]
  %v324 = vld [vmem:[%s3 + $0x3c] sm:$0xf]
  %v325 = vld [vmem:[%s3 + $0x40] sm:$0xf]
  %v326 = vld [vmem:[%s3 + $0x44] sm:$0xf]
  %v327 = vld [vmem:[%s3 + $0x48] sm:$0xf]
  %v328 = vld [vmem:[%s3 + $0x4c] sm:$0xf]
  %v329 = vld [vmem:[%s3 + $0x50] sm:$0xf]
  %v330 = vld [vmem:[%s3 + $0x54] sm:$0xf]
  %v331 = vld [vmem:[%s3 + $0x58] sm:$0xf]
  %v332 = vld [vmem:[%s3 + $0x5c] sm:$0xf]
  %v333 = vld [vmem:[%s3 + $0x60] sm:$0xf]
  %v334 = vld [vmem:[%s3 + $0x64] sm:$0xf]
  %v335 = vld [vmem:[%s3 + $0x68] sm:$0xf]
  %v336 = vld [vmem:[%s3 + $0x6c] sm:$0xf]
  %v337 = vld [vmem:[%s3 + $0x70] sm:$0xf]
  %v338 = vld [vmem:[%s3 + $0x74] sm:$0xf]
  %v339 = vld [vmem:[%s3 + $0x78] sm:$0xf]
  %v340 = vld [vmem:[%s3 + $0x7c] sm:$0xf]
  %v341 = vld [vmem:[%s3 + $0x80] sm:$0xf]
  %v342 = vld [vmem:[%s3 + $0x84] sm:$0xf]
  %v343 = vld [vmem:[%s3 + $0x88] sm:$0xf]
  %v344 = vld [vmem:[%s3 + $0x8c] sm:$0xf]
  %v345 = vld [vmem:[%s3 + $0x90] sm:$0xf]
  %v346 = vld [vmem:[%s3 + $0x94] sm:$0xf]
  %v347 = vld [vmem:[%s3 + $0x98] sm:$0xf]
  %v348 = vld [vmem:[%s3 + $0x9c] sm:$0xf]
  %v349 = vld [vmem:[%s3 + $0xa0] sm:$0xf]
  %v350 = vld [vmem:[%s3 + $0xa4] sm:$0xf]
  %v351 = vld [vmem:[%s3 + $0xa8] sm:$0xf]
  %v352 = vld [vmem:[%s3 + $0xac] sm:$0xf]
  %v353 = vld [vmem:[%s3 + $0xb0] sm:$0xf]
  %v354 = vld [vmem:[%s3 + $0xb4] sm:$0xf]
  %v355 = vld [vmem:[%s3 + $0xb8] sm:$0xf]
  %v356 = vld [vmem:[%s3 + $0xbc] sm:$0xf]
  %v357 = vld [vmem:[%s3 + $0xc0] sm:$0xf]
  %v358 = vld [vmem:[%s3 + $0xc4] sm:$0xf]
  %v359 = vld [vmem:[%s3 + $0xc8] sm:$0xf]
  %v360 = vld [vmem:[%s3 + $0xcc] sm:$0xf]
  %v361 = vld [vmem:[%s3 + $0xd0] sm:$0xf]
  %v362 = vld [vmem:[%s3 + $0xd4] sm:$0xf]
  %v363 = vld [vmem:[%s3 + $0xd8] sm:$0xf]
  %v364 = vld [vmem:[%s3 + $0xdc] sm:$0xf]
  %v365 = vld [vmem:[%s3 + $0xe0] sm:$0xf]
  %v366 = vld [vmem:[%s3 + $0xe4] sm:$0xf]
  %v367 = vld [vmem:[%s3 + $0xe8] sm:$0xf]
  %v368 = vld [vmem:[%s3 + $0xec] sm:$0xf]
  %v369 = vld [vmem:[%s3 + $0xf0] sm:$0xf]
  %v370 = vld [vmem:[%s3 + $0xf4] sm:$0xf]
  %v371 = vld [vmem:[%s3 + $0xf8] sm:$0xf]
  %v372 = vld [vmem:[%s3 + $0xfc] sm:$0xf]
  %v373 = vld [vmem:[%s3 + $0x100] sm:$0xf]
  %v374 = vld [vmem:[%s3 + $0x104] sm:$0xf]
  %v375 = vld [vmem:[%s3 + $0x108] sm:$0xf]
  %v376 = vld [vmem:[%s3 + $0x10c] sm:$0xf]
  %v377 = vld [vmem:[%s3 + $0x110] sm:$0xf]
  %v378 = vld [vmem:[%s3 + $0x114] sm:$0xf]
  %v379 = vld [vmem:[%s3 + $0x118] sm:$0xf]
  %v380 = vld [vmem:[%s3 + $0x11c] sm:$0xf]
  %v381 = vld [vmem:[%s3 + $0x120] sm:$0xf]
  %v382 = vld [vmem:[%s3 + $0x124] sm:$0xf]
  %v383 = vld [vmem:[%s3 + $0x128] sm:$0xf]
  %v384 = vld [vmem:[%s3 + $0x12c] sm:$0xf]
  %v385 = vld [vmem:[%s3 + $0x130] sm:$0xf]
  %v386 = vld [vmem:[%s3 + $0x134] sm:$0xf]
  %v387 = vld [vmem:[%s3 + $0x138] sm:$0xf]
  %v388 = vld [vmem:[%s3 + $0x13c] sm:$0xf]
  %v389 = vld [vmem:[%s3 + $0x140] sm:$0xf]
  %v390 = vld [vmem:[%s3 + $0x144] sm:$0xf]
  %v391 = vld [vmem:[%s3 + $0x148] sm:$0xf]
  %v392 = vld [vmem:[%s3 + $0x14c] sm:$0xf]
  %v393 = vld [vmem:[%s3 + $0x150] sm:$0xf]
  %v394 = vld [vmem:[%s3 + $0x154] sm:$0xf]
  %v395 = vld [vmem:[%s3 + $0x158] sm:$0xf]
  %v396 = vld [vmem:[%s3 + $0x15c] sm:$0xf]
  %v397 = vld [vmem:[%s3 + $0x160] sm:$0xf]
  %v398 = vld [vmem:[%s3 + $0x164] sm:$0xf]
  %v399 = vld [vmem:[%s3 + $0x168] sm:$0xf]
  %v400 = vld [vmem:[%s3 + $0x16c] sm:$0xf]
  %v401 = vld [vmem:[%s3 + $0x170] sm:$0xf]
  %v402 = vld [vmem:[%s3 + $0x174] sm:$0xf]
  %v403 = vld [vmem:[%s3 + $0x178] sm:$0xf]
  %v404 = vld [vmem:[%s3 + $0x17c] sm:$0xf]
  %v405 = vld [vmem:[%s3 + $0x180] sm:$0xf]
  %v406 = vld [vmem:[%s3 + $0x184] sm:$0xf]
  %v407 = vld [vmem:[%s3 + $0x188] sm:$0xf]
  %v408 = vld [vmem:[%s3 + $0x18c] sm:$0xf]
  %v409 = vld [vmem:[%s3 + $0x190] sm:$0xf]
  %v410 = vld [vmem:[%s3 + $0x194] sm:$0xf]
  %v411 = vld [vmem:[%s3 + $0x198] sm:$0xf]
  %v412 = vld [vmem:[%s3 + $0x19c] sm:$0xf]
  %v413 = vld [vmem:[%s3 + $0x1a0] sm:$0xf]
  %v414 = vld [vmem:[%s3 + $0x1a4] sm:$0xf]
  %v415 = vld [vmem:[%s3 + $0x1a8] sm:$0xf]
  %v416 = vld [vmem:[%s3 + $0x1ac] sm:$0xf]
  %v417 = vld [vmem:[%s3 + $0x1b0] sm:$0xf]
  %v418 = vld [vmem:[%s3 + $0x1b4] sm:$0xf]
  %v419 = vld [vmem:[%s3 + $0x1b8] sm:$0xf]
  %v420 = vld [vmem:[%s3 + $0x1bc] sm:$0xf]
  %v421 = vlaneseq
  %v422 = vshrl.u32 %v421, 7
  %v423 = vsub.s32 3, %v422
  %v424 = vrot.slane %v27, %v423
  %v426 = vcombine.high %v308, %v308
  %v428 = vunpack.c.l.s4 1966171168
  %v429 = vunpack.c.0.s8 %v428
  %v430 = vlaneseq
  %v431 = vshrl.u32 %v430, 7
  %v432 = vsub.s32 %v429, %v431
  %v433 = vrot.slane %v308, %v432
  %v435 = vunpack.c.l.s4 1966171168
  %v436 = vunpack.c.0.s8 %v435
  %v437 = vlaneseq
  %v438 = vshrl.u32 %v437, 7
  %v439 = vsub.s32 %v436, %v438
  %v440 = vrot.slane %v426, %v439
  %v441 = vcombine.high %v433, %v433
  %v442 = vcombine.high %v440, %v440
  %v444 = vunpack.c.l.s4 1966171168
  %v445 = vunpack.c.0.s8 %v444
  %v446 = vlaneseq
  %v447 = vshrl.u32 %v446, 7
  %v448 = vsub.s32 %v445, %v447
  %v449 = vrot.slane %v433, %v448
  %v451 = vunpack.c.l.s4 1966171168
  %v452 = vunpack.c.0.s8 %v451
  %v453 = vlaneseq
  %v454 = vshrl.u32 %v453, 7
  %v455 = vsub.s32 %v452, %v454
  %v456 = vrot.slane %v440, %v455
  %v458 = vunpack.c.l.s4 1966171168
  %v459 = vunpack.c.0.s8 %v458
  %v460 = vlaneseq
  %v461 = vshrl.u32 %v460, 7
  %v462 = vsub.s32 %v459, %v461
  %v463 = vrot.slane %v441, %v462
  %v465 = vunpack.c.l.s4 1966171168
  %v466 = vunpack.c.0.s8 %v465
  %v467 = vlaneseq
  %v468 = vshrl.u32 %v467, 7
  %v469 = vsub.s32 %v466, %v468
  %v470 = vrot.slane %v442, %v469
  %v471 = vcombine.high %v449, %v449
  %v472 = vcombine.high %v456, %v456
  %v473 = vcombine.high %v463, %v463
  %v593 = vunpack.c.l.b16 %v309
  %v594 = vunpack.c.l.b16 %v310
  %v595 = vunpack.c.l.b16 %v311
  %v596 = vunpack.c.l.b16 %v312
  %v597 = vunpack.c.l.b16 %v313
  %v598 = vunpack.c.l.b16 %v314
  %v599 = vunpack.c.l.b16 %v315
  %v600 = vunpack.c.l.b16 %v316
  %v601 = vunpack.c.l.b16 %v317
  %v602 = vunpack.c.l.b16 %v318
  %v603 = vunpack.c.l.b16 %v319
  %v604 = vunpack.c.l.b16 %v320
  %v605 = vunpack.c.l.b16 %v321
  %v606 = vunpack.c.l.b16 %v322
  %v607 = vunpack.c.l.b16 %v323
  %v608 = vunpack.c.l.b16 %v324
  %v609 = vunpack.c.l.b16 %v325
  %v610 = vunpack.c.l.b16 %v326
  %v611 = vunpack.c.l.b16 %v327
  %v612 = vunpack.c.l.b16 %v328
  %v613 = vunpack.c.l.b16 %v329
  %v614 = vunpack.c.l.b16 %v330
  %v615 = vunpack.c.l.b16 %v331
  %v616 = vunpack.c.l.b16 %v332
  %v617 = vunpack.c.l.b16 %v333
  %v618 = vunpack.c.l.b16 %v334
  %v619 = vunpack.c.l.b16 %v335
  %v620 = vunpack.c.l.b16 %v336
  %v621 = vunpack.c.l.b16 %v337
  %v622 = vunpack.c.l.b16 %v338
  %v623 = vunpack.c.l.b16 %v339
  %v624 = vunpack.c.l.b16 %v340
  %v625 = vunpack.c.l.b16 %v341
  %v626 = vunpack.c.l.b16 %v342
  %v627 = vunpack.c.l.b16 %v343
  %v628 = vunpack.c.l.b16 %v344
  %v629 = vunpack.c.l.b16 %v345
  %v630 = vunpack.c.l.b16 %v346
  %v631 = vunpack.c.l.b16 %v347
  %v632 = vunpack.c.l.b16 %v348
  %v633 = vunpack.c.l.b16 %v349
  %v634 = vunpack.c.l.b16 %v350
  %v635 = vunpack.c.l.b16 %v351
  %v636 = vunpack.c.l.b16 %v352
  %v637 = vunpack.c.l.b16 %v353
  %v638 = vunpack.c.l.b16 %v354
  %v639 = vunpack.c.l.b16 %v355
  %v640 = vunpack.c.l.b16 %v356
  %v641 = vunpack.c.l.b16 %v357
  %v642 = vunpack.c.l.b16 %v358
  %v643 = vunpack.c.l.b16 %v359
  %v644 = vunpack.c.l.b16 %v360
  %v645 = vunpack.c.l.b16 %v361
  %v646 = vunpack.c.l.b16 %v362
  %v647 = vunpack.c.l.b16 %v363
  %v648 = vunpack.c.l.b16 %v364
  %v649 = vunpack.c.l.b16 %v365
  %v650 = vunpack.c.l.b16 %v366
  %v651 = vunpack.c.l.b16 %v367
  %v652 = vunpack.c.l.b16 %v368
  %v653 = vunpack.c.l.b16 %v369
  %v654 = vunpack.c.l.b16 %v370
  %v655 = vunpack.c.l.b16 %v371
  %v656 = vunpack.c.l.b16 %v372
  %v657 = vunpack.c.l.b16 %v373
  %v658 = vunpack.c.l.b16 %v374
  %v659 = vunpack.c.l.b16 %v375
  %v660 = vunpack.c.l.b16 %v376
  %v661 = vunpack.c.l.b16 %v377
  %v662 = vunpack.c.l.b16 %v378
  %v663 = vunpack.c.l.b16 %v379
  %v664 = vunpack.c.l.b16 %v380
  %v665 = vunpack.c.l.b16 %v381
  %v666 = vunpack.c.l.b16 %v382
  %v667 = vunpack.c.l.b16 %v383
  %v668 = vunpack.c.l.b16 %v384
  %v669 = vunpack.c.l.b16 %v385
  %v670 = vunpack.c.l.b16 %v386
  %v671 = vunpack.c.l.b16 %v387
  %v672 = vunpack.c.l.b16 %v388
  %v673 = vunpack.c.l.b16 %v389
  %v674 = vunpack.c.l.b16 %v390
  %v675 = vunpack.c.l.b16 %v391
  %v676 = vunpack.c.l.b16 %v392
  %v677 = vunpack.c.l.b16 %v393
  %v678 = vunpack.c.l.b16 %v394
  %v679 = vunpack.c.l.b16 %v395
  %v680 = vunpack.c.l.b16 %v396
  %v681 = vunpack.c.l.b16 %v397
  %v682 = vunpack.c.l.b16 %v398
  %v683 = vunpack.c.l.b16 %v399
  %v684 = vunpack.c.l.b16 %v400
  %v685 = vunpack.c.l.b16 %v401
  %v686 = vunpack.c.l.b16 %v402
  %v687 = vunpack.c.l.b16 %v403
  %v688 = vunpack.c.l.b16 %v404
  %v689 = vunpack.c.l.b16 %v405
  %v690 = vunpack.c.l.b16 %v406
  %v691 = vunpack.c.l.b16 %v407
  %v692 = vunpack.c.l.b16 %v408
  %v693 = vunpack.c.l.b16 %v409
  %v694 = vunpack.c.l.b16 %v410
  %v695 = vunpack.c.l.b16 %v411
  %v696 = vunpack.c.l.b16 %v412
  %v697 = vunpack.c.l.b16 %v413
  %v698 = vunpack.c.l.b16 %v414
  %v699 = vunpack.c.l.b16 %v415
  %v700 = vunpack.c.l.b16 %v416
  %v701 = vunpack.c.l.b16 %v417
  %v702 = vunpack.c.l.b16 %v418
  %v703 = vunpack.c.l.b16 %v419
  %v704 = vunpack.c.l.b16 %v420
  %v705 = vpack.c.b16 %v594, %v593
  %v706 = vpack.c.b16 %v596, %v595
  %v707 = vpack.c.b16 %v598, %v597
  %v708 = vpack.c.b16 %v600, %v599
  %v709 = vpack.c.b16 %v602, %v601
  %v710 = vpack.c.b16 %v604, %v603
  %v711 = vpack.c.b16 %v606, %v605
  %v712 = vpack.c.b16 %v608, %v607
  %v713 = vpack.c.b16 %v610, %v609
  %v714 = vpack.c.b16 %v612, %v611
  %v715 = vpack.c.b16 %v614, %v613
  %v716 = vpack.c.b16 %v616, %v615
  %v717 = vpack.c.b16 %v618, %v617
  %v718 = vpack.c.b16 %v620, %v619
  %v719 = vpack.c.b16 %v622, %v621
  %v720 = vpack.c.b16 %v624, %v623
  %v721 = vpack.c.b16 %v626, %v625
  %v722 = vpack.c.b16 %v628, %v627
  %v723 = vpack.c.b16 %v630, %v629
  %v724 = vpack.c.b16 %v632, %v631
  %v725 = vpack.c.b16 %v634, %v633
  %v726 = vpack.c.b16 %v636, %v635
  %v727 = vpack.c.b16 %v638, %v637
  %v728 = vpack.c.b16 %v640, %v639
  %v729 = vpack.c.b16 %v642, %v641
  %v730 = vpack.c.b16 %v644, %v643
  %v731 = vpack.c.b16 %v646, %v645
  %v732 = vpack.c.b16 %v648, %v647
  %v733 = vpack.c.b16 %v650, %v649
  %v734 = vpack.c.b16 %v652, %v651
  %v735 = vpack.c.b16 %v654, %v653
  %v736 = vpack.c.b16 %v656, %v655
  %v737 = vpack.c.b16 %v658, %v657
  %v738 = vpack.c.b16 %v660, %v659
  %v739 = vpack.c.b16 %v662, %v661
  %v740 = vpack.c.b16 %v664, %v663
  %v741 = vpack.c.b16 %v666, %v665
  %v742 = vpack.c.b16 %v668, %v667
  %v743 = vpack.c.b16 %v670, %v669
  %v744 = vpack.c.b16 %v672, %v671
  %v745 = vpack.c.b16 %v674, %v673
  %v746 = vpack.c.b16 %v676, %v675
  %v747 = vpack.c.b16 %v678, %v677
  %v748 = vpack.c.b16 %v680, %v679
  %v749 = vpack.c.b16 %v682, %v681
  %v750 = vpack.c.b16 %v684, %v683
  %v751 = vpack.c.b16 %v686, %v685
  %v752 = vpack.c.b16 %v688, %v687
  %v753 = vpack.c.b16 %v690, %v689
  %v754 = vpack.c.b16 %v692, %v691
  %v755 = vpack.c.b16 %v694, %v693
  %v756 = vpack.c.b16 %v696, %v695
  %v757 = vpack.c.b16 %v698, %v697
  %v758 = vpack.c.b16 %v700, %v699
  %v759 = vpack.c.b16 %v702, %v701
  %v760 = vpack.c.b16 %v704, %v703
  %817 = vmatprep.subr.bf16.mxu0 0
  %818 = vmatpush1.bf16.msra.mxu0 %v712
  %819 = vmatprep.subr.bf16.mxu0 0
  %820 = vmatpush1.bf16.msra.mxu0 %v711
  %821 = vmatprep.subr.bf16.mxu0 0
  %822 = vmatpush1.bf16.msra.mxu0 %v710
  %823 = vmatprep.subr.bf16.mxu0 0
  %824 = vmatpush1.bf16.msra.mxu0 %v709
  %825 = vmatprep.subr.bf16.mxu0 0
  %826 = vmatpush1.bf16.msra.mxu0 %v708
  %827 = vmatprep.subr.bf16.mxu0 0
  %828 = vmatpush1.bf16.msra.mxu0 %v707
  %829 = vmatprep.subr.bf16.mxu0 0
  %830 = vmatpush1.bf16.msra.mxu0 %v706
  %831 = vmatprep.subr.bf16.mxu0 0
  %832 = vmatpush1.bf16.msra.mxu0 %v705
  %833 = vmatprep.subr.bf16.mxu0 0
  %834 = vmatpush2.bf16.msra.mxu0 %v720
  %835 = vmatprep.subr.bf16.mxu0 0
  %836 = vmatpush2.bf16.msra.mxu0 %v719
  %837 = vmatprep.subr.bf16.mxu0 0
  %838 = vmatpush2.bf16.msra.mxu0 %v718
  %839 = vmatprep.subr.bf16.mxu0 0
  %840 = vmatpush2.bf16.msra.mxu0 %v717
  %841 = vmatprep.subr.bf16.mxu0 0
  %842 = vmatpush2.bf16.msra.mxu0 %v716
  %843 = vmatprep.subr.bf16.mxu0 0
  %844 = vmatpush2.bf16.msra.mxu0 %v715
  %845 = vmatprep.subr.bf16.mxu0 0
  %846 = vmatpush2.bf16.msra.mxu0 %v714
  %847 = vmatprep.subr.bf16.mxu0 0
  %848 = vmatpush2.bf16.msra.mxu0 %v713
  %849 = vmatprep.mubr.bf16.mxu0 %v463
  %850 = vmatmul.mubr.bf16.gmra.mxu0 %v449
  %v851 = vpop.f32.mrf.mxu0
  %v852 = vadd.f32 %v424, %v851
  %v853 = vpop.f32.mrf.mxu0
  %v854 = vpop.f32.mrf.mxu0
  %v855 = vpop.f32.mrf.mxu0
  %856 = vdwg.mxu0
  %857 = vmatprep.subr.bf16.mxu0 0
  %858 = vmatpush1.bf16.msra.mxu0 %v728
  %859 = vmatprep.subr.bf16.mxu0 0
  %860 = vmatpush1.bf16.msra.mxu0 %v727
  %861 = vmatprep.subr.bf16.mxu0 0
  %862 = vmatpush1.bf16.msra.mxu0 %v726
  %863 = vmatprep.subr.bf16.mxu0 0
  %864 = vmatpush1.bf16.msra.mxu0 %v725
  %865 = vmatprep.subr.bf16.mxu0 0
  %866 = vmatpush1.bf16.msra.mxu0 %v724
  %867 = vmatprep.subr.bf16.mxu0 0
  %868 = vmatpush1.bf16.msra.mxu0 %v723
  %869 = vmatprep.subr.bf16.mxu0 0
  %870 = vmatpush1.bf16.msra.mxu0 %v722
  %871 = vmatprep.subr.bf16.mxu0 0
  %872 = vmatpush1.bf16.msra.mxu0 %v721
  %873 = vmatprep.subr.bf16.mxu0 0
  %874 = vmatpush2.bf16.msra.mxu0 %v736
  %875 = vmatprep.subr.bf16.mxu0 0
  %876 = vmatpush2.bf16.msra.mxu0 %v735
  %877 = vmatprep.subr.bf16.mxu0 0
  %878 = vmatpush2.bf16.msra.mxu0 %v734
  %879 = vmatprep.subr.bf16.mxu0 0
  %880 = vmatpush2.bf16.msra.mxu0 %v733
  %881 = vmatprep.subr.bf16.mxu0 0
  %882 = vmatpush2.bf16.msra.mxu0 %v732
  %883 = vmatprep.subr.bf16.mxu0 0
  %884 = vmatpush2.bf16.msra.mxu0 %v731
  %885 = vmatprep.subr.bf16.mxu0 0
  %886 = vmatpush2.bf16.msra.mxu0 %v730
  %887 = vmatprep.subr.bf16.mxu0 0
  %888 = vmatpush2.bf16.msra.mxu0 %v729
  %889 = vmatprep.mubr.bf16.mxu0 %v473
  %890 = vmatmul.mubr.bf16.gmra.mxu0 %v471
  %v891 = vpop.f32.mrf.mxu0
  %v892 = vadd.f32 %v852, %v891
  %v893 = vpop.f32.mrf.mxu0
  %v894 = vpop.f32.mrf.mxu0
  %v895 = vpop.f32.mrf.mxu0
  %896 = vdwg.mxu0
  %897 = vmatprep.subr.bf16.mxu0 0
  %898 = vmatpush1.bf16.msra.mxu0 %v744
  %899 = vmatprep.subr.bf16.mxu0 0
  %900 = vmatpush1.bf16.msra.mxu0 %v743
  %901 = vmatprep.subr.bf16.mxu0 0
  %902 = vmatpush1.bf16.msra.mxu0 %v742
  %903 = vmatprep.subr.bf16.mxu0 0
  %904 = vmatpush1.bf16.msra.mxu0 %v741
  %905 = vmatprep.subr.bf16.mxu0 0
  %906 = vmatpush1.bf16.msra.mxu0 %v740
  %907 = vmatprep.subr.bf16.mxu0 0
  %908 = vmatpush1.bf16.msra.mxu0 %v739
  %909 = vmatprep.subr.bf16.mxu0 0
  %910 = vmatpush1.bf16.msra.mxu0 %v738
  %911 = vmatprep.subr.bf16.mxu0 0
  %912 = vmatpush1.bf16.msra.mxu0 %v737
  %913 = vmatprep.subr.bf16.mxu0 0
  %914 = vmatpush2.bf16.msra.mxu0 %v752
  %915 = vmatprep.subr.bf16.mxu0 0
  %916 = vmatpush2.bf16.msra.mxu0 %v751
  %917 = vmatprep.subr.bf16.mxu0 0
  %918 = vmatpush2.bf16.msra.mxu0 %v750
  %919 = vmatprep.subr.bf16.mxu0 0
  %920 = vmatpush2.bf16.msra.mxu0 %v749
  %921 = vmatprep.subr.bf16.mxu0 0
  %922 = vmatpush2.bf16.msra.mxu0 %v748
  %923 = vmatprep.subr.bf16.mxu0 0
  %924 = vmatpush2.bf16.msra.mxu0 %v747
  %925 = vmatprep.subr.bf16.mxu0 0
  %926 = vmatpush2.bf16.msra.mxu0 %v746
  %927 = vmatprep.subr.bf16.mxu0 0
  %928 = vmatpush2.bf16.msra.mxu0 %v745
  %929 = vmatprep.mubr.bf16.mxu0 %v470
  %930 = vmatmul.mubr.bf16.gmra.mxu0 %v456
  %v931 = vpop.f32.mrf.mxu0
  %v932 = vadd.f32 %v892, %v931
  %v933 = vpop.f32.mrf.mxu0
  %v934 = vpop.f32.mrf.mxu0
  %v935 = vpop.f32.mrf.mxu0
  %936 = vdwg.mxu0
  %937 = vmatprep.subr.bf16.mxu0 0
  %938 = vmatpush1.bf16.msra.mxu0 %v760
  %939 = vmatprep.subr.bf16.mxu0 0
  %940 = vmatpush1.bf16.msra.mxu0 %v759
  %941 = vmatprep.subr.bf16.mxu0 0
  %942 = vmatpush1.bf16.msra.mxu0 %v758
  %943 = vmatprep.subr.bf16.mxu0 0
  %944 = vmatpush1.bf16.msra.mxu0 %v757
  %945 = vmatprep.subr.bf16.mxu0 0
  %946 = vmatpush1.bf16.msra.mxu0 %v756
  %947 = vmatprep.subr.bf16.mxu0 0
  %948 = vmatpush1.bf16.msra.mxu0 %v755
  %949 = vmatprep.subr.bf16.mxu0 0
  %950 = vmatpush1.bf16.msra.mxu0 %v754
  %951 = vmatprep.subr.bf16.mxu0 0
  %952 = vmatpush1.bf16.msra.mxu0 %v753
  %953 = vmatprep.subr.bf16.mxu0 0
  %954 = vmatpush2.bf16.msra.mxu0 0
  %955 = vmatprep.subr.bf16.mxu0 0
  %956 = vmatpush2.bf16.msra.mxu0 0
  %957 = vmatprep.subr.bf16.mxu0 0
  %958 = vmatpush2.bf16.msra.mxu0 0
  %959 = vmatprep.subr.bf16.mxu0 0
  %960 = vmatpush2.bf16.msra.mxu0 0
  %961 = vmatprep.subr.bf16.mxu0 0
  %962 = vmatpush2.bf16.msra.mxu0 0
  %963 = vmatprep.subr.bf16.mxu0 0
  %964 = vmatpush2.bf16.msra.mxu0 0
  %965 = vmatprep.subr.bf16.mxu0 0
  %966 = vmatpush2.bf16.msra.mxu0 0
  %967 = vmatprep.subr.bf16.mxu0 0
  %968 = vmatpush2.bf16.msra.mxu0 0
  %969 = vmatprep.mubr.bf16.mxu0 0
  %970 = vmatmul.mubr.bf16.gmra.mxu0 %v472
  %v971 = vpop.f32.mrf.mxu0
  %v972 = vadd.f32 %v932, %v971
  %v973 = vpop.f32.mrf.mxu0
  %v974 = vpop.f32.mrf.mxu0
  %v975 = vpop.f32.mrf.mxu0
  %976 = vdwg.mxu0
  %v977 = vsel %vm257, %v972, 0.0
  %v978 = vrot.slane %v977, 4
  %v979 = vadd.f32 %v977, %v978
  %v980 = vrot.slane %v979, 2
  %v981 = vadd.f32 %v979, %v980
  %v982 = vrot.slane %v981, 1
  %v983 = vadd.f32 %v981, %v982
  %v984 = vrcp.pop 2.0
  %v985 = vmul.f32 %v983, %v984
  %v986 = vsub.f32 %v972, %v985
  %v987 = vmul.f32 %v986, %v986
  %v988 = vsel %vm257, %v987, 0.0
  %v989 = vrot.slane %v988, 4
  %v990 = vadd.f32 %v988, %v989
  %v991 = vrot.slane %v990, 2
  %v992 = vadd.f32 %v990, %v991
  %v993 = vrot.slane %v992, 1
  %v994 = vadd.f32 %v992, %v993
  %v995 = vmul.f32 %v994, %v984
  %v996 = vadd.f32 %v995, 1e-05
  %v997 = vrsqrt.pop %v996
  %v998 = vmul.f32 %v986, %v997
  %v999 = vlaneseq
  %v1000 = vshrl.u32 %v999, 7
  %v1001 = vsub.s32 4, %v1000
  %v1002 = vrot.slane %v27, %v1001
  %v1003 = vmul.f32 %v998, %v1002
  %v1004 = vlaneseq
  %v1005 = vshrl.u32 %v1004, 7
  %v1006 = vsub.s32 5, %v1005
  %v1007 = vrot.slane %v27, %v1006
  %v1008 = vadd.f32 %v1003, %v1007
  %v1009 = vmax.f32 %v1008, 0.0
  %v1011 = vrot.slane %v305, 2
  %1012 = vrot.lane.b32.xlu0 %v1011, 32
  %v1013 = vpop.permute.xlu0 %1012
  %v1015 = vrot.slane %v305, 6
  %1016 = vrot.lane.b32.xlu0 %v1015, 64
  %v1017 = vpop.permute.xlu0 %1016
  %1020 = vrot.lane.b32.xlu0 %v306, 96
  %v1021 = vpop.permute.xlu0 %1020
  %v1023 = vsel %vm253, %v305, %v1013
  %vm1024 = vcmask 523264
  %v1025 = vsel %vm1024, %v1023, %v1017
  %vm1026 = vcmask 785408
  %v1027 = vsel %vm1026, %v1025, %v1021
  %v1028 = vrot.slane %v306, 6
  %1029 = vrot.lane.b32.xlu0 %v1028, 64
  %v1030 = vpop.permute.xlu0 %1029
  %v1032 = vsel %vm1024, %v1023, %v1030
  %v1033 = vsel %vm1026, %v1032, %v1021
  %v1034 = vrot.slane %v306, 2
  %1035 = vrot.lane.b32.xlu0 %v1034, 32
  %v1036 = vpop.permute.xlu0 %1035
  %v1038 = vsel %vm253, %v305, %v1036
  %v1039 = vsel %vm1024, %v1038, %v1030
  %v1040 = vsel %vm1026, %v1039, %v1021
  %1042 = vrot.lane.b32.xlu0 %v307, 96
  %v1043 = vpop.permute.xlu0 %1042
  %v1045 = vsel %vm253, %v306, %v1036
  %v1046 = vsel %vm1024, %v1045, %v1030
  %v1047 = vsel %vm1026, %v1046, %v1043
  %v1049 = vrot.slane %v1040, 2
  %v1052 = vrot.slane %v1047, 2
  %vm1054 = vcmask 1041408
  %v1055 = vsel %vm1054, %v1027, %v1033
  %v1056 = vsel %vm234, %v1055, %v1049
  %v1057 = vsel %vm205, %v1056, %v1052
  %v1058 = vld [vmem:[%s4] sm:$0xff]
  %v1059 = vld [vmem:[%s4 + $0x8] sm:$0xff]
  %v1060 = vld [vmem:[%s4 + $0x10] sm:$0xff]
  %v1061 = vld [vmem:[%s4 + $0x18] sm:$0xff]
  %v1062 = vld [vmem:[%s4 + $0x20] sm:$0xff]
  %v1063 = vld [vmem:[%s4 + $0x28] sm:$0xff]
  %v1064 = vld [vmem:[%s4 + $0x30] sm:$0xff]
  %v1065 = vld [vmem:[%s4 + $0x38] sm:$0xff]
  %v1066 = vld [vmem:[%s4 + $0x40] sm:$0xff]
  %v1067 = vld [vmem:[%s4 + $0x48] sm:$0xff]
  %v1068 = vld [vmem:[%s4 + $0x50] sm:$0xff]
  %v1069 = vld [vmem:[%s4 + $0x58] sm:$0xff]
  %v1070 = vld [vmem:[%s4 + $0x60] sm:$0xff]
  %v1071 = vld [vmem:[%s4 + $0x68] sm:$0xff]
  %v1072 = vld [vmem:[%s4 + $0x70] sm:$0xff]
  %v1073 = vld [vmem:[%s4 + $0x78] sm:$0xff]
  %1074 = vmatprep.subr.mxu0 0.0
  %1075 = vmatpush1.msra.mxu0 %v1073
  %1076 = vmatprep.subr.mxu0 0.0
  %1077 = vmatpush1.msra.mxu0 %v1072
  %1078 = vmatprep.subr.mxu0 0.0
  %1079 = vmatpush1.msra.mxu0 %v1071
  %1080 = vmatprep.subr.mxu0 0.0
  %1081 = vmatpush1.msra.mxu0 %v1070
  %1082 = vmatprep.subr.mxu0 0.0
  %1083 = vmatpush1.msra.mxu0 %v1069
  %1084 = vmatprep.subr.mxu0 0.0
  %1085 = vmatpush1.msra.mxu0 %v1068
  %1086 = vmatprep.subr.mxu0 0.0
  %1087 = vmatpush1.msra.mxu0 %v1067
  %1088 = vmatprep.subr.mxu0 0.0
  %1089 = vmatpush1.msra.mxu0 %v1066
  %1090 = vmatprep.subr.mxu0 0.0
  %1091 = vmatpush1.msra.mxu0 %v1065
  %1092 = vmatprep.subr.mxu0 0.0
  %1093 = vmatpush1.msra.mxu0 %v1064
  %1094 = vmatprep.subr.mxu0 0.0
  %1095 = vmatpush1.msra.mxu0 %v1063
  %1096 = vmatprep.subr.mxu0 0.0
  %1097 = vmatpush1.msra.mxu0 %v1062
  %1098 = vmatprep.subr.mxu0 0.0
  %1099 = vmatpush1.msra.mxu0 %v1061
  %1100 = vmatprep.subr.mxu0 0.0
  %1101 = vmatpush1.msra.mxu0 %v1060
  %1102 = vmatprep.subr.mxu0 0.0
  %1103 = vmatpush1.msra.mxu0 %v1059
  %1104 = vmatprep.subr.mxu0 0.0
  %1105 = vmatpush1.msra.mxu0 %v1058
  %1106 = vmatprep.subr.mxu0 0.0
  %1107 = vmatpush2.msra.mxu0 0.0
  %1108 = vmatprep.subr.mxu0 0.0
  %1109 = vmatpush2.msra.mxu0 0.0
  %1110 = vmatprep.subr.mxu0 0.0
  %1111 = vmatpush2.msra.mxu0 0.0
  %1112 = vmatprep.subr.mxu0 0.0
  %1113 = vmatpush2.msra.mxu0 0.0
  %1114 = vmatprep.subr.mxu0 0.0
  %1115 = vmatpush2.msra.mxu0 0.0
  %1116 = vmatprep.subr.mxu0 0.0
  %1117 = vmatpush2.msra.mxu0 0.0
  %1118 = vmatprep.subr.mxu0 0.0
  %1119 = vmatpush2.msra.mxu0 0.0
  %1120 = vmatprep.subr.mxu0 0.0
  %1121 = vmatpush2.msra.mxu0 0.0
  %1122 = vmatprep.subr.mxu0 0.0
  %1123 = vmatpush2.msra.mxu0 0.0
  %1124 = vmatprep.subr.mxu0 0.0
  %1125 = vmatpush2.msra.mxu0 0.0
  %1126 = vmatprep.subr.mxu0 0.0
  %1127 = vmatpush2.msra.mxu0 0.0
  %1128 = vmatprep.subr.mxu0 0.0
  %1129 = vmatpush2.msra.mxu0 0.0
  %1130 = vmatprep.subr.mxu0 0.0
  %1131 = vmatpush2.msra.mxu0 0.0
  %1132 = vmatprep.subr.mxu0 0.0
  %1133 = vmatpush2.msra.mxu0 0.0
  %1134 = vmatprep.subr.mxu0 0.0
  %1135 = vmatpush2.msra.mxu0 0.0
  %1136 = vmatprep.subr.mxu0 0.0
  %1137 = vmatpush2.msra.mxu0 0.0
  %1138 = vmatprep.mubr.f32.mxu0 0.0
  %1139 = vmatmul.mubr.f32.gmra.mxu0 %v1057
  %v1140 = vpop.f32.mrf.mxu0
  %v1141 = vadd.f32 0.0, %v1140
  %v1142 = vpop.f32.mrf.mxu0
  %1143 = vdwg.mxu0
  %v1145 = vrot.slane %v1141, 2
  %v1147 = vmax.f32 %v1141, %v1145
  %v1149 = vrot.slane %v1147, 4
  %v1151 = vmax.f32 %v1147, %v1149
  %v1152 = vlaneseq
  %v1153 = vshrl.u32 %v1152, 7
  %v1154 = vsub.s32 6, %v1153
  %v1155 = vrot.slane %v27, %v1154
  %v1156 = vadd.f32 %v1151, %v1155
  %vm1157 = vcmask 123904
  %v1158 = vsel %vm1157, %v1156, 0.0
  %v1159 = vrot.slane %v1158, 4
  %v1160 = vadd.f32 %v1158, %v1159
  %v1161 = vrot.slane %v1160, 2
  %v1162 = vadd.f32 %v1160, %v1161
  %v1163 = vrot.slane %v1162, 1
  %v1164 = vadd.f32 %v1162, %v1163
  %v1165 = vmul.f32 %v1164, %v984
  %v1166 = vsub.f32 %v1156, %v1165
  %v1167 = vmul.f32 %v1166, %v1166
  %v1168 = vsel %vm1157, %v1167, 0.0
  %v1169 = vrot.slane %v1168, 4
  %v1170 = vadd.f32 %v1168, %v1169
  %v1171 = vrot.slane %v1170, 2
  %v1172 = vadd.f32 %v1170, %v1171
  %v1173 = vrot.slane %v1172, 1
  %v1174 = vadd.f32 %v1172, %v1173
  %v1175 = vmul.f32 %v1174, %v984
  %v1176 = vadd.f32 %v1175, 1e-05
  %v1177 = vrsqrt.pop %v1176
  %v1178 = vmul.f32 %v1166, %v1177
  %v1179 = vlaneseq
  %v1180 = vshrl.u32 %v1179, 7
  %v1181 = vsub.s32 7, %v1180
  %v1182 = vrot.slane %v27, %v1181
  %v1183 = vmul.f32 %v1178, %v1182
  %v1184 = vlaneseq
  %v1185 = vshrl.u32 %v1184, 7
  %v1186 = vsub.s32 0, %v1185
  %v1187 = vrot.slane %v28, %v1186
  %v1188 = vadd.f32 %v1183, %v1187
  %v1189 = vmax.f32 %v1188, 0.0
  %1191 = vrot.lane.b32.xlu0 %v1189, 32
  %v1192 = vpop.permute.xlu0 %1191
  %v1194 = vsel %vm253, %v1009, %v1192
  %v1195 = vld [vmem:[%s5] sm:$0xff]
  %v1196 = vld [vmem:[%s5 + $0x8] sm:$0xff]
  %v1197 = vld [vmem:[%s5 + $0x10] sm:$0xff]
  %v1198 = vld [vmem:[%s5 + $0x18] sm:$0xff]
  %v1199 = vld [vmem:[%s5 + $0x20] sm:$0xff]
  %v1200 = vld [vmem:[%s5 + $0x28] sm:$0xff]
  %v1201 = vlaneseq
  %v1202 = vshrl.u32 %v1201, 7
  %v1203 = vsub.s32 1, %v1202
  %v1204 = vrot.slane %v28, %v1203
  %vm1205 = vcmask 392192
  %v1207 = vsel %vm1205, %v1194, 0
  %1209 = vmatprep.subr.mxu0 0.0
  %1210 = vmatpush1.msra.mxu0 0.0
  %1211 = vmatprep.subr.mxu0 0.0
  %1212 = vmatpush1.msra.mxu0 0.0
  %1213 = vmatprep.subr.mxu0 0.0
  %1214 = vmatpush1.msra.mxu0 0.0
  %1215 = vmatprep.subr.mxu0 0.0
  %1216 = vmatpush1.msra.mxu0 0.0
  %1217 = vmatprep.subr.mxu0 0.0
  %1218 = vmatpush1.msra.mxu0 0.0
  %1219 = vmatprep.subr.mxu0 0.0
  %1220 = vmatpush1.msra.mxu0 0.0
  %1221 = vmatprep.subr.mxu0 0.0
  %1222 = vmatpush1.msra.mxu0 0.0
  %1223 = vmatprep.subr.mxu0 0.0
  %1224 = vmatpush1.msra.mxu0 0.0
  %1225 = vmatprep.subr.mxu0 0.0
  %1226 = vmatpush1.msra.mxu0 0.0
  %1227 = vmatprep.subr.mxu0 0.0
  %1228 = vmatpush1.msra.mxu0 0.0
  %1229 = vmatprep.subr.mxu0 0.0
  %1230 = vmatpush1.msra.mxu0 %v1200
  %1231 = vmatprep.subr.mxu0 0.0
  %1232 = vmatpush1.msra.mxu0 %v1199
  %1233 = vmatprep.subr.mxu0 0.0
  %1234 = vmatpush1.msra.mxu0 %v1198
  %1235 = vmatprep.subr.mxu0 0.0
  %1236 = vmatpush1.msra.mxu0 %v1197
  %1237 = vmatprep.subr.mxu0 0.0
  %1238 = vmatpush1.msra.mxu0 %v1196
  %1239 = vmatprep.subr.mxu0 0.0
  %1240 = vmatpush1.msra.mxu0 %v1195
  %1241 = vmatprep.subr.mxu0 0.0
  %1242 = vmatpush2.msra.mxu0 0.0
  %1243 = vmatprep.subr.mxu0 0.0
  %1244 = vmatpush2.msra.mxu0 0.0
  %1245 = vmatprep.subr.mxu0 0.0
  %1246 = vmatpush2.msra.mxu0 0.0
  %1247 = vmatprep.subr.mxu0 0.0
  %1248 = vmatpush2.msra.mxu0 0.0
  %1249 = vmatprep.subr.mxu0 0.0
  %1250 = vmatpush2.msra.mxu0 0.0
  %1251 = vmatprep.subr.mxu0 0.0
  %1252 = vmatpush2.msra.mxu0 0.0
  %1253 = vmatprep.subr.mxu0 0.0
  %1254 = vmatpush2.msra.mxu0 0.0
  %1255 = vmatprep.subr.mxu0 0.0
  %1256 = vmatpush2.msra.mxu0 0.0
  %1257 = vmatprep.subr.mxu0 0.0
  %1258 = vmatpush2.msra.mxu0 0.0
  %1259 = vmatprep.subr.mxu0 0.0
  %1260 = vmatpush2.msra.mxu0 0.0
  %1261 = vmatprep.subr.mxu0 0.0
  %1262 = vmatpush2.msra.mxu0 0.0
  %1263 = vmatprep.subr.mxu0 0.0
  %1264 = vmatpush2.msra.mxu0 0.0
  %1265 = vmatprep.subr.mxu0 0.0
  %1266 = vmatpush2.msra.mxu0 0.0
  %1267 = vmatprep.subr.mxu0 0.0
  %1268 = vmatpush2.msra.mxu0 0.0
  %1269 = vmatprep.subr.mxu0 0.0
  %1270 = vmatpush2.msra.mxu0 0.0
  %1271 = vmatprep.subr.mxu0 0.0
  %1272 = vmatpush2.msra.mxu0 0.0
  %1273 = vmatprep.mubr.f32.mxu0 0.0
  %1274 = vmatmul.mubr.f32.gmra.mxu0 %v1207
  %v1275 = vpop.f32.mrf.mxu0
  %v1276 = vadd.f32 %v1204, %v1275
  %v1277 = vpop.f32.mrf.mxu0
  %1278 = vdwg.mxu0
  %v1279 = vsel %vm1157, %v1276, 0.0
  %v1280 = vrot.slane %v1279, 4
  %v1281 = vadd.f32 %v1279, %v1280
  %v1282 = vrot.slane %v1281, 2
  %v1283 = vadd.f32 %v1281, %v1282
  %v1284 = vrot.slane %v1283, 1
  %v1285 = vadd.f32 %v1283, %v1284
  %v1286 = vmul.f32 %v1285, %v984
  %v1287 = vsub.f32 %v1276, %v1286
  %v1288 = vmul.f32 %v1287, %v1287
  %v1289 = vsel %vm1157, %v1288, 0.0
  %v1290 = vrot.slane %v1289, 4
  %v1291 = vadd.f32 %v1289, %v1290
  %v1292 = vrot.slane %v1291, 2
  %v1293 = vadd.f32 %v1291, %v1292
  %v1294 = vrot.slane %v1293, 1
  %v1295 = vadd.f32 %v1293, %v1294
  %v1296 = vmul.f32 %v1295, %v984
  %v1297 = vadd.f32 %v1296, 1e-05
  %v1298 = vrsqrt.pop %v1297
  %v1299 = vmul.f32 %v1287, %v1298
  %v1300 = vlaneseq
  %v1301 = vshrl.u32 %v1300, 7
  %v1302 = vsub.s32 2, %v1301
  %v1303 = vrot.slane %v28, %v1302
  %v1304 = vmul.f32 %v1299, %v1303
  %v1305 = vlaneseq
  %v1306 = vshrl.u32 %v1305, 7
  %v1307 = vsub.s32 3, %v1306
  %v1308 = vrot.slane %v28, %v1307
  %v1309 = vadd.f32 %v1304, %v1308
  %v1310 = vmax.f32 %v1309, 0.0
  %v1311 = vlaneseq
  %v1312 = vshrl.u32 %v1311, 7
  %v1313 = vsub.s32 4, %v1312
  %v1314 = vrot.slane %v28, %v1313
  %v1315 = vmul.f32 %v1310, %v1314
  %v1316 = vsel %vm1157, %v1315, 0.0
  %1317 = vadd.xlane.f32.xlu0 %v1316
  %v1318 = vpop.xlane.xlu0 %1317
  %v1319 = vlaneseq
  %v1320 = vshrl.u32 %v1319, 7
  %v1321 = vsub.s32 5, %v1320
  %v1322 = vrot.slane %v28, %v1321
  %v1323 = vadd.f32 %v1318, %v1322
  %v1324 = vrcp.pop 100.0
  %v1325 = vmul.f32 %v1323, %v1324
  %v1326 = vxor.u32 %v1325, 2147483648
  %v1327 = vmul.f32 %v1326, 1.442695
  %v1328 = vpow.pop %v1327
  %v1329 = vadd.f32 %v1328, 1.0
  %v1330 = vrcp.pop %v1329
  %v1331 = vmul.f32 1.0, %v1330
  %vm1332 = vcmask 1024
  %1333 = vst.msk [vmem:[%s7] sm:$0x3] %vm1332, %v1331
  // Predicated region
  $region30: #{forward.1} parent=0 // pred_check
    _
  $region31: #{forward.1} parent=0 // pred_check_branch
    %1335 = sbr.rel (0) target = $region33
  $region32: #{forward.1} parent=0 // pred_region
    _
  $region33: #{forward.1} parent=0 // pred_fallthru
    _
  // Predicated region
  $region34: #{forward.1} parent=0 // pred_check
    _
  $region35: #{forward.1} parent=0 // pred_check_branch
    %1337 = sbr.rel (0) target = $region37
  $region36: #{forward.1} parent=0 // pred_region
    _
  $region37: #{forward.1} parent=0 // pred_fallthru
    _

</llo_original>
